<compile_context>
chip_gen: v7x
topology: tpu7x:2x2x1
jax: 0.10.0
libtpu: 0.0.40
codegen_flags: <defaults>
</compile_context>

<pallas_src>
import functools
import math

import jax
import jax.numpy as jnp
from jax.experimental import pallas as pl
from jax.experimental.pallas import tpu as pltpu


def _mha_kernel(x_ref, wqkv_ref, bqkv_ref, wo_ref, bo_ref, o_ref, *, head):
    """Fused multi-head attention for one batch element.

    x_ref:    (1, n, c)           VMEM
    wqkv_ref: (3*head, c, ch)     VMEM  (pre-transposed, per-head, Q-scale folded in)
    bqkv_ref: (3*head, 1, ch)     VMEM
    wo_ref:   (head, ch, c)       VMEM  (pre-transposed, per-head)
    bo_ref:   (1, c)              VMEM
    o_ref:    (1, n, c)           VMEM
    """
    x = x_ref[0]                                   # (n, c)
    n, c = x.shape
    ch = c // head
    g = 3 * head

    # Fused, head-batched QKV projection: one batched MXU op -> (3*head, n, ch).
    xb = jnp.broadcast_to(x[None, :, :], (g, n, c))
    qkv = jnp.einsum("gnc,gcd->gnd", xb, wqkv_ref[...],
                     preferred_element_type=jnp.float32) + bqkv_ref[...]

    q = qkv[:head]                                 # (head, n, ch)  (already * 1/sqrt(ch))
    k = qkv[head:2 * head]                         # (head, n, ch)
    v = qkv[2 * head:]                             # (head, n, ch)

    # Head-batched scaled dot-product attention (lane-dense over the key axis).
    s = jnp.einsum("hqd,hkd->hqk", q, k,
                   preferred_element_type=jnp.float32)          # (head, n, n)
    s = s - jnp.max(s, axis=-1, keepdims=True)
    e = jnp.exp(s)
    inv_denom = pl.reciprocal(jnp.sum(e, axis=-1, keepdims=True), approx=True)
    p = e * inv_denom                                            # softmax probs
    att = jnp.einsum("hqk,hkd->hqd", p, v,
                     preferred_element_type=jnp.float32)         # (head, n, ch)

    # Per-head output projection + reduction over heads; single lane-dense store.
    out = jnp.einsum("hqd,hdc->hqc", att, wo_ref[...],
                     preferred_element_type=jnp.float32)         # (head, n, c)
    o_ref[0] = (jnp.sum(out, axis=0) + bo_ref[...]).astype(o_ref.dtype)


def multi_headed_attention(x, params, head):
    """x: (b, n, c) f32; params: dict proj -> (W (out,in), b (out,)) in PyTorch layout."""
    b, n, c = x.shape
    ch = c // head
    scale = 1.0 / math.sqrt(ch)

    wq, bq = params["q"]
    wk, bk = params["k"]
    wv, bv = params["v"]
    wo, bo = params["o"]

    # One-time XLA-side weight prep (pre-transpose + per-head split + fuse).
    def heads_w(w):  # (out, in) -> (head, in, ch)
        return jnp.transpose(jnp.reshape(w.T, (c, head, ch)), (1, 0, 2))

    def heads_b(bvec):  # (c,) -> (head, 1, ch)
        return jnp.reshape(bvec, (head, 1, ch))

    w_qkv = jnp.concatenate(
        [heads_w(wq) * scale, heads_w(wk), heads_w(wv)], axis=0)        # (3H, c, ch)
    b_qkv = jnp.concatenate(
        [heads_b(bq) * scale, heads_b(bk), heads_b(bv)], axis=0)        # (3H, 1, ch)
    wo_h = jnp.reshape(wo.T, (head, ch, c))                             # (H, ch, c)
    bo_r = jnp.reshape(bo, (1, c))                                      # (1, c)

    kernel = functools.partial(_mha_kernel, head=head)

    return pl.pallas_call(
        kernel,
        out_shape=jax.ShapeDtypeStruct((b, n, c), jnp.float32),
        grid_spec=pltpu.PrefetchScalarGridSpec(
            num_scalar_prefetch=0,
            grid=(b,),
            in_specs=[
                pl.BlockSpec((1, n, c), lambda i: (i, 0, 0)),           # x (per batch)
                # Constant block indices -> weights stay resident in VMEM across
                # grid steps (no per-batch re-DMA).
                pl.BlockSpec((3 * head, c, ch), lambda i: (0, 0, 0)),   # fused QKV W
                pl.BlockSpec((3 * head, 1, ch), lambda i: (0, 0, 0)),   # fused QKV b
                pl.BlockSpec((head, ch, c), lambda i: (0, 0, 0)),       # output W
                pl.BlockSpec((1, c), lambda i: (0, 0)),                 # output b
            ],
            out_specs=pl.BlockSpec((1, n, c), lambda i: (i, 0, 0)),
        ),
        compiler_params=pltpu.CompilerParams(
            dimension_semantics=("parallel",)),
    )(x, w_qkv, b_qkv, wo_h, bo_r)


def _reference(x, params, head):
    """Plain-JAX reference matching the PyTorch forward (eval mode)."""
    b, n, c = x.shape
    ch = c // head

    def lin(t, w, bia):
        return jnp.einsum("bnc,oc->bno", t, w) + bia

    q = lin(x, *params["q"]).reshape(b, n, head, ch).transpose(0, 2, 1, 3)
    k = lin(x, *params["k"]).reshape(b, n, head, ch).transpose(0, 2, 1, 3)
    v = lin(x, *params["v"]).reshape(b, n, head, ch).transpose(0, 2, 1, 3)
    s = jnp.einsum("bhqd,bhkd->bhqk", q, k) / math.sqrt(ch)
    p = jax.nn.softmax(s, axis=-1)
    att = jnp.einsum("bhqk,bhkd->bhqd", p, v)
    att = att.transpose(0, 2, 1, 3).reshape(b, n, c)
    return lin(att, *params["o"])


if __name__ == "__main__":
    b, n, c, head = 2, 8, 32, 4
    key = jax.random.PRNGKey(0)
    kx, kq, kk, kv, ko, kbq, kbk, kbv, kbo = jax.random.split(key, 9)

    x = jax.random.normal(kx, (b, n, c), dtype=jnp.float32)
    scale = 1.0 / math.sqrt(c)
    params = {
        "q": (jax.random.uniform(kq, (c, c), jnp.float32, -scale, scale),
              jax.random.uniform(kbq, (c,), jnp.float32, -scale, scale)),
        "k": (jax.random.uniform(kk, (c, c), jnp.float32, -scale, scale),
              jax.random.uniform(kbk, (c,), jnp.float32, -scale, scale)),
        "v": (jax.random.uniform(kv, (c, c), jnp.float32, -scale, scale),
              jax.random.uniform(kbv, (c,), jnp.float32, -scale, scale)),
        "o": (jax.random.uniform(ko, (c, c), jnp.float32, -scale, scale),
              jax.random.uniform(kbo, (c,), jnp.float32, -scale, scale)),
    }

    out = multi_headed_attention(x, params, head)
    out = jax.block_until_ready(out)

    ref = _reference(x, params, head)
    assert out.shape == (b, n, c)
    # Slightly relaxed tolerance: approx reciprocal in the softmax + folded-scale
    # reassociation vs the straight reference math (still f32 end-to-end).
    assert jnp.allclose(out, ref, atol=1e-3, rtol=1e-3), "mismatch vs reference"
    print("KERNEL_OK")
</pallas_src>

<mosaic_0001>
module attributes {stable_mosaic.version = 11 : i64} {
  func.func @_mha_kernel(%arg0: i32, %arg1: memref<1x8x32xf32, #tpu.memory_space<vmem>>, %arg2: memref<12x32x8xf32, #tpu.memory_space<vmem>>, %arg3: memref<12x1x8xf32, #tpu.memory_space<vmem>>, %arg4: memref<4x8x32xf32, #tpu.memory_space<vmem>>, %arg5: memref<1x32xf32, #tpu.memory_space<vmem>>, %arg6: memref<1x8x32xf32, #tpu.memory_space<vmem>>) attributes {dimension_semantics = [#tpu.dimension_semantics<parallel>], iteration_bounds = array<i64: 2>, scalar_prefetch = 0 : i64, scratch_operands = 0 : i64, tpu.core_type = #tpu.core_type<tc>, window_params = [{transform_indices = @transform_0, window_bounds = array<i64: 1, 8, 32>}, {pipeline_mode = #tpu.pipeline_mode<synchronous>, transform_indices = @transform_1, window_bounds = array<i64: 12, 32, 8>}, {pipeline_mode = #tpu.pipeline_mode<synchronous>, transform_indices = @transform_2, window_bounds = array<i64: 12, 1, 8>}, {pipeline_mode = #tpu.pipeline_mode<synchronous>, transform_indices = @transform_3, window_bounds = array<i64: 4, 8, 32>}, {pipeline_mode = #tpu.pipeline_mode<synchronous>, transform_indices = @transform_4, window_bounds = array<i64: 1, 32>}, {transform_indices = @transform_5, window_bounds = array<i64: 1, 8, 32>}]} {
    %c0 = arith.constant 0 : index
    %c0_0 = arith.constant 0 : index
    %c0_1 = arith.constant 0 : index
    %0 = vector.load %arg1[%c0, %c0_0, %c0_1] : memref<1x8x32xf32, #tpu.memory_space<vmem>>, vector<1x8x32xf32>
    %1 = vector.shape_cast %0 : vector<1x8x32xf32> to vector<8x32xf32>
    %2 = vector.shape_cast %1 : vector<8x32xf32> to vector<1x8x32xf32>
    %3 = vector.shape_cast %2 : vector<1x8x32xf32> to vector<1x8x32xf32>
    %4 = vector.broadcast %3 : vector<1x8x32xf32> to vector<12x8x32xf32>
    %c0_2 = arith.constant 0 : index
    %c0_3 = arith.constant 0 : index
    %c0_4 = arith.constant 0 : index
    %5 = vector.load %arg2[%c0_2, %c0_3, %c0_4] : memref<12x32x8xf32, #tpu.memory_space<vmem>>, vector<12x32x8xf32>
    "tpu.trace_start"() <{level = 10 : i32, message = "gnc,gcd->gnd"}> : () -> ()
    %cst = arith.constant dense<0.000000e+00> : vector<12x8x8xf32>
    %6 = tpu.matmul %4, %5, %cst {dimension_numbers = #tpu.dot_dimension_numbers<[2], [1], [1], [2], [0, 0, 0, 1, 1, 2], [0], [0]>} : vector<12x8x32xf32>, vector<12x32x8xf32>, vector<12x8x8xf32> -> vector<12x8x8xf32>
    "tpu.trace_stop"() : () -> ()
    %c0_5 = arith.constant 0 : index
    %c0_6 = arith.constant 0 : index
    %c0_7 = arith.constant 0 : index
    %7 = vector.load %arg3[%c0_5, %c0_6, %c0_7] : memref<12x1x8xf32, #tpu.memory_space<vmem>>, vector<12x1x8xf32>
    %8 = vector.broadcast %7 : vector<12x1x8xf32> to vector<12x8x8xf32>
    %9 = arith.addf %6, %8 : vector<12x8x8xf32>
    %10 = vector.extract_strided_slice %9 {offsets = [0, 0, 0], sizes = [4, 8, 8], strides = [1, 1, 1]} : vector<12x8x8xf32> to vector<4x8x8xf32>
    %11 = vector.extract_strided_slice %9 {offsets = [4, 0, 0], sizes = [4, 8, 8], strides = [1, 1, 1]} : vector<12x8x8xf32> to vector<4x8x8xf32>
    %12 = vector.extract_strided_slice %9 {offsets = [8, 0, 0], sizes = [4, 8, 8], strides = [1, 1, 1]} : vector<12x8x8xf32> to vector<4x8x8xf32>
    "tpu.trace_start"() <{level = 10 : i32, message = "hqd,hkd->hqk"}> : () -> ()
    %cst_8 = arith.constant dense<0.000000e+00> : vector<4x8x8xf32>
    %13 = tpu.matmul %10, %11, %cst_8 {dimension_numbers = #tpu.dot_dimension_numbers<[2], [2], [1], [1], [0, 0, 0, 1, 1, 1], [0], [0]>} : vector<4x8x8xf32>, vector<4x8x8xf32>, vector<4x8x8xf32> -> vector<4x8x8xf32>
    "tpu.trace_stop"() : () -> ()
    %cst_9 = arith.constant dense<0xFF800000> : vector<4x8xf32>
    %14 = vector.multi_reduction <maximumf>, %13, %cst_9 [2] : vector<4x8x8xf32> to vector<4x8xf32>
    %15 = vector.shape_cast %14 : vector<4x8xf32> to vector<4x8x1xf32>
    %16 = vector.broadcast %15 : vector<4x8x1xf32> to vector<4x8x8xf32>
    %17 = arith.subf %13, %16 : vector<4x8x8xf32>
    %18 = math.exp %17 : vector<4x8x8xf32>
    %cst_10 = arith.constant dense<0.000000e+00> : vector<4x8xf32>
    %19 = vector.multi_reduction <add>, %18, %cst_10 [2] : vector<4x8x8xf32> to vector<4x8xf32>
    %20 = vector.shape_cast %19 : vector<4x8xf32> to vector<4x8x1xf32>
    %21 = tpu.reciprocal %20 {approx = true} : vector<4x8x1xf32> -> vector<4x8x1xf32>
    %22 = vector.broadcast %21 : vector<4x8x1xf32> to vector<4x8x8xf32>
    %23 = arith.mulf %18, %22 : vector<4x8x8xf32>
    "tpu.trace_start"() <{level = 10 : i32, message = "hqk,hkd->hqd"}> : () -> ()
    %cst_11 = arith.constant dense<0.000000e+00> : vector<4x8x8xf32>
    %24 = tpu.matmul %23, %12, %cst_11 {dimension_numbers = #tpu.dot_dimension_numbers<[2], [1], [1], [2], [0, 0, 0, 1, 1, 2], [0], [0]>} : vector<4x8x8xf32>, vector<4x8x8xf32>, vector<4x8x8xf32> -> vector<4x8x8xf32>
    "tpu.trace_stop"() : () -> ()
    %c0_12 = arith.constant 0 : index
    %c0_13 = arith.constant 0 : index
    %c0_14 = arith.constant 0 : index
    %25 = vector.load %arg4[%c0_12, %c0_13, %c0_14] : memref<4x8x32xf32, #tpu.memory_space<vmem>>, vector<4x8x32xf32>
    "tpu.trace_start"() <{level = 10 : i32, message = "hqd,hdc->hqc"}> : () -> ()
    %cst_15 = arith.constant dense<0.000000e+00> : vector<4x8x32xf32>
    %26 = tpu.matmul %24, %25, %cst_15 {dimension_numbers = #tpu.dot_dimension_numbers<[2], [1], [1], [2], [0, 0, 0, 1, 1, 2], [0], [0]>} : vector<4x8x8xf32>, vector<4x8x32xf32>, vector<4x8x32xf32> -> vector<4x8x32xf32>
    "tpu.trace_stop"() : () -> ()
    %cst_16 = arith.constant dense<0.000000e+00> : vector<8x32xf32>
    %27 = vector.multi_reduction <add>, %26, %cst_16 [0] : vector<4x8x32xf32> to vector<8x32xf32>
    %c0_17 = arith.constant 0 : index
    %c0_18 = arith.constant 0 : index
    %28 = vector.load %arg5[%c0_17, %c0_18] : memref<1x32xf32, #tpu.memory_space<vmem>>, vector<1x32xf32>
    %29 = vector.broadcast %28 : vector<1x32xf32> to vector<8x32xf32>
    %30 = arith.addf %27, %29 : vector<8x32xf32>
    %c0_19 = arith.constant 0 : index
    %c0_20 = arith.constant 0 : index
    %c0_21 = arith.constant 0 : index
    %31 = vector.load %arg6[%c0_19, %c0_20, %c0_21] : memref<1x8x32xf32, #tpu.memory_space<vmem>>, vector<1x8x32xf32>
    %32 = vector.shape_cast %31 : vector<1x8x32xf32> to vector<8x32xf32>
    %33 = vector.shape_cast %30 : vector<8x32xf32> to vector<1x8x32xf32>
    tpu.vector_store %arg6[%c0_19, %c0_20, %c0_21], %33 {strides = array<i32>} : memref<1x8x32xf32, #tpu.memory_space<vmem>>, vector<1x8x32xf32>,
    return
  }
  func.func @transform_0(%arg0: i32) -> (i32, i32, i32) {
    %c0_i32 = arith.constant 0 : i32
    %c0_i32_0 = arith.constant 0 : i32
    %c0_i32_1 = arith.constant 0 : i32
    return %arg0, %c0_i32, %c0_i32_0 : i32, i32, i32
  }
  func.func @transform_1(%arg0: i32) -> (i32, i32, i32) {
    %c0_i32 = arith.constant 0 : i32
    %c0_i32_0 = arith.constant 0 : i32
    %c0_i32_1 = arith.constant 0 : i32
    %c0_i32_2 = arith.constant 0 : i32
    return %c0_i32, %c0_i32_0, %c0_i32_1 : i32, i32, i32
  }
  func.func @transform_2(%arg0: i32) -> (i32, i32, i32) {
    %c0_i32 = arith.constant 0 : i32
    %c0_i32_0 = arith.constant 0 : i32
    %c0_i32_1 = arith.constant 0 : i32
    %c0_i32_2 = arith.constant 0 : i32
    return %c0_i32, %c0_i32_0, %c0_i32_1 : i32, i32, i32
  }
  func.func @transform_3(%arg0: i32) -> (i32, i32, i32) {
    %c0_i32 = arith.constant 0 : i32
    %c0_i32_0 = arith.constant 0 : i32
    %c0_i32_1 = arith.constant 0 : i32
    %c0_i32_2 = arith.constant 0 : i32
    return %c0_i32, %c0_i32_0, %c0_i32_1 : i32, i32, i32
  }
  func.func @transform_4(%arg0: i32) -> (i32, i32) {
    %c0_i32 = arith.constant 0 : i32
    %c0_i32_0 = arith.constant 0 : i32
    %c0_i32_1 = arith.constant 0 : i32
    return %c0_i32, %c0_i32_0 : i32, i32
  }
  func.func @transform_5(%arg0: i32) -> (i32, i32, i32) {
    %c0_i32 = arith.constant 0 : i32
    %c0_i32_0 = arith.constant 0 : i32
    %c0_i32_1 = arith.constant 0 : i32
    return %arg0, %c0_i32, %c0_i32_0 : i32, i32, i32
  }
}

</mosaic_0001>

<llo_original>
// kernel: tpu_custom_call.1
$region0: #{tpu_custom_call.1}
  #allocation0 [shape = 'u32[]', space=smem, size = 0x4, offset = 0x4, fixed_abs, tag = 'smem constant byte address 0x4 - core index']
  #allocation1 [shape = 'u32[144,128]{1,0:T(1,128)}', space=vmem, size = 0x12000, scoped, tag = 'internal scratch']
  %s0 = inlined_call_operand.vmem [shape: f32[2,8,32], index: 0, kind: input, shape index: {}]
  %s1 = inlined_call_operand.vmem [shape: f32[12,32,8], index: 1, kind: input, shape index: {}]
  %s2 = inlined_call_operand.vmem [shape: f32[12,1,8], index: 2, kind: input, shape index: {}]
  %s3 = inlined_call_operand.vmem [shape: f32[4,8,32], index: 3, kind: input, shape index: {}]
  %s4 = inlined_call_operand.vmem [shape: f32[1,32], index: 4, kind: input, shape index: {}]
  %s5 = inlined_call_operand.hbm [shape: f32[2,8,32], index: 5, kind: output, shape index: {}]
  %s6 = sld [smem:[#allocation0]]
  $region53: #{tpu_custom_call.1} parent=0
    _
  %s8 = ssub.s32 1, %s6
  %s9 = scalar_select 0, %s8, %s6
  $region1: #{tpu_custom_call.1} parent=0
    #allocation2 [shape = 'u8[8192]{0}', space=vmem, size = 0x2000, scoped, tag = 'output window, operand 0']
    #allocation3 [shape = 's32[2]{0}', space=sflag, size = 0x8, scoped, tag = 'scoped memory for tpu_custom_call.1']
    %10 = vsyncpa [#allocation3], 0
    %s11 = scalar_lea.sflag [#allocation3], 1
    %12 = vsyncpa %s11, 0
    loop: start=0, step=1, limit=4
    $region2: #{tpu_custom_call.1} parent=1 // loop_pre_header
      _
    $region3: #{tpu_custom_call.1} parent=1 // loop_header
      %s14 = sphi 0, %s18
      %p15 = scmp.ge.s32.totalorder %s14, 4
      %s24 = sphi 0, %s26
      %s27 = sphi 0, %s24
      %s28 = sphi 0, %s27
      %s44 = sphi 0, %s28
      %s48 = sphi 0, %s48
      %s50 = sphi 0, %s48
      %s51 = sphi 0, %s50
      %s65 = sphi 0, %s51
      %s69 = sphi 0, %s69
      %s71 = sphi 0, %s69
      %s72 = sphi 0, %s71
      %s86 = sphi 0, %s72
      %s90 = sphi 0, %s90
      %s92 = sphi 0, %s90
      %s93 = sphi 0, %s92
      %s107 = sphi 0, %s93
      %s111 = sphi 0, %s111
      %s113 = sphi 0, %s111
      %s114 = sphi 0, %s113
      %s128 = sphi 0, %s114
      %s134 = sphi 0, %s136
      %s137 = sphi 0, %s134
      %s138 = sphi 0, %s137
      %s154 = sphi 0, %s138
    $region4: #{tpu_custom_call.1} parent=1 // loop_header_branch
      %17 = sbr.rel (%p15) target = $region8
    $region5: #{tpu_custom_call.1} parent=1 // loop_body
      %s19 = ssub.s32 %s14, 1
      %s20 = ssub.s32 %s14, 2
      %s21 = sadd.s32 %s14, 1
      %s22 = ssub.s32 %s14, %s21
      %p23 = scmp.eq.s32.totalorder %s22, 0
      %s25 = sadd.s32 %s24, 1
      %s26 = scalar_select %p23, %s24, %s25
      %p29 = pneg %p23
      %p30 = scmp.eq.s32.totalorder %s14, 1
      %p31 = por %p29, %p30
      %p32 = scmp.ne.s32.totalorder %s24, %s27
      %p33 = scmp.eq.s32.totalorder %s14, 0
      %p34 = por %p32, %p33
      %p35 = scmp.ne.s32.totalorder %s24, %s27
      %p36 = scmp.eq.s32.totalorder %s19, 1
      %p37 = por %p35, %p36
      %p38 = scmp.ne.s32.totalorder %s27, %s28
      %p39 = scmp.eq.s32.totalorder %s19, 0
      %p40 = por %p38, %p39
      %p41 = scmp.ne.s32.totalorder %s27, %s28
      %p42 = scmp.eq.s32.totalorder %s20, 1
      %p43 = por %p41, %p42
      %p45 = scmp.ne.s32.totalorder %s28, %s44
      %p46 = scmp.eq.s32.totalorder %s20, 0
      %p47 = por %p45, %p46
      %s49 = sadd.s32 %s48, 1
      %p52 = scmp.eq.s32.totalorder %s14, 1
      %p53 = scmp.ne.s32.totalorder %s48, %s50
      %p54 = scmp.eq.s32.totalorder %s14, 0
      %p55 = por %p53, %p54
      %p56 = scmp.ne.s32.totalorder %s48, %s50
      %p57 = scmp.eq.s32.totalorder %s19, 1
      %p58 = por %p56, %p57
      %p59 = scmp.ne.s32.totalorder %s50, %s51
      %p60 = scmp.eq.s32.totalorder %s19, 0
      %p61 = por %p59, %p60
      %p62 = scmp.ne.s32.totalorder %s50, %s51
      %p63 = scmp.eq.s32.totalorder %s20, 1
      %p64 = por %p62, %p63
      %p66 = scmp.ne.s32.totalorder %s51, %s65
      %p67 = scmp.eq.s32.totalorder %s20, 0
      %p68 = por %p66, %p67
      %s70 = sadd.s32 %s69, 1
      %p73 = scmp.eq.s32.totalorder %s14, 1
      %p74 = scmp.ne.s32.totalorder %s69, %s71
      %p75 = scmp.eq.s32.totalorder %s14, 0
      %p76 = por %p74, %p75
      %p77 = scmp.ne.s32.totalorder %s69, %s71
      %p78 = scmp.eq.s32.totalorder %s19, 1
      %p79 = por %p77, %p78
      %p80 = scmp.ne.s32.totalorder %s71, %s72
      %p81 = scmp.eq.s32.totalorder %s19, 0
      %p82 = por %p80, %p81
      %p83 = scmp.ne.s32.totalorder %s71, %s72
      %p84 = scmp.eq.s32.totalorder %s20, 1
      %p85 = por %p83, %p84
      %p87 = scmp.ne.s32.totalorder %s72, %s86
      %p88 = scmp.eq.s32.totalorder %s20, 0
      %p89 = por %p87, %p88
      %s91 = sadd.s32 %s90, 1
      %p94 = scmp.eq.s32.totalorder %s14, 1
      %p95 = scmp.ne.s32.totalorder %s90, %s92
      %p96 = scmp.eq.s32.totalorder %s14, 0
      %p97 = por %p95, %p96
      %p98 = scmp.ne.s32.totalorder %s90, %s92
      %p99 = scmp.eq.s32.totalorder %s19, 1
      %p100 = por %p98, %p99
      %p101 = scmp.ne.s32.totalorder %s92, %s93
      %p102 = scmp.eq.s32.totalorder %s19, 0
      %p103 = por %p101, %p102
      %p104 = scmp.ne.s32.totalorder %s92, %s93
      %p105 = scmp.eq.s32.totalorder %s20, 1
      %p106 = por %p104, %p105
      %p108 = scmp.ne.s32.totalorder %s93, %s107
      %p109 = scmp.eq.s32.totalorder %s20, 0
      %p110 = por %p108, %p109
      %s112 = sadd.s32 %s111, 1
      %p115 = scmp.eq.s32.totalorder %s14, 1
      %p116 = scmp.ne.s32.totalorder %s111, %s113
      %p117 = scmp.eq.s32.totalorder %s14, 0
      %p118 = por %p116, %p117
      %p119 = scmp.ne.s32.totalorder %s111, %s113
      %p120 = scmp.eq.s32.totalorder %s19, 1
      %p121 = por %p119, %p120
      %p122 = scmp.ne.s32.totalorder %s113, %s114
      %p123 = scmp.eq.s32.totalorder %s19, 0
      %p124 = por %p122, %p123
      %p125 = scmp.ne.s32.totalorder %s113, %s114
      %p126 = scmp.eq.s32.totalorder %s20, 1
      %p127 = por %p125, %p126
      %p129 = scmp.ne.s32.totalorder %s114, %s128
      %p130 = scmp.eq.s32.totalorder %s20, 0
      %p131 = por %p129, %p130
      %s132 = ssub.s32 %s14, %s21
      %p133 = scmp.eq.s32.totalorder %s132, 0
      %s135 = sadd.s32 %s134, 1
      %s136 = scalar_select %p133, %s134, %s135
      %p139 = pneg %p133
      %p140 = scmp.eq.s32.totalorder %s14, 1
      %p141 = por %p139, %p140
      %p142 = scmp.ne.s32.totalorder %s134, %s137
      %p143 = scmp.eq.s32.totalorder %s14, 0
      %p144 = por %p142, %p143
      %p145 = scmp.ne.s32.totalorder %s134, %s137
      %p146 = scmp.eq.s32.totalorder %s19, 1
      %p147 = por %p145, %p146
      %p148 = scmp.ne.s32.totalorder %s137, %s138
      %p149 = scmp.eq.s32.totalorder %s19, 0
      %p150 = por %p148, %p149
      %p151 = scmp.ne.s32.totalorder %s137, %s138
      %p152 = scmp.eq.s32.totalorder %s20, 1
      %p153 = por %p151, %p152
      %p155 = scmp.ne.s32.totalorder %s138, %s154
      %p156 = scmp.eq.s32.totalorder %s20, 0
      %p157 = por %p155, %p156
      %p158 = scmp.le.s32.totalorder 1, %s14
      %p159 = scmp.lt.s32.totalorder %s14, 3
      %p160 = pnand %p158, %p159
      %p161 = pneg %p160
      // Predicated region
      $region9: #{tpu_custom_call.1} parent=5 // pred_check
        _
      $region10: #{tpu_custom_call.1} parent=5 // pred_check_branch
        %163 = sbr.rel (%p160) target = $region12
      $region11: #{tpu_custom_call.1} parent=5 // pred_region
        %s164 = ssub.s32 %s14, 1
        // Predicated region
        $region13: #{tpu_custom_call.1} parent=11 // pred_check
          %p165 = pneg %p61
        $region14: #{tpu_custom_call.1} parent=11 // pred_check_branch
          %167 = sbr.rel (%p165) target = $region16
        $region15: #{tpu_custom_call.1} parent=11 // pred_region
          _
        $region16: #{tpu_custom_call.1} parent=11 // pred_fallthru
          _
        // Predicated region
        $region17: #{tpu_custom_call.1} parent=11 // pred_check
          %p168 = pneg %p82
        $region18: #{tpu_custom_call.1} parent=11 // pred_check_branch
          %170 = sbr.rel (%p168) target = $region20
        $region19: #{tpu_custom_call.1} parent=11 // pred_region
          _
        $region20: #{tpu_custom_call.1} parent=11 // pred_fallthru
          _
        // Predicated region
        $region21: #{tpu_custom_call.1} parent=11 // pred_check
          %p171 = pneg %p103
        $region22: #{tpu_custom_call.1} parent=11 // pred_check_branch
          %173 = sbr.rel (%p171) target = $region24
        $region23: #{tpu_custom_call.1} parent=11 // pred_region
          _
        $region24: #{tpu_custom_call.1} parent=11 // pred_fallthru
          _
        // Predicated region
        $region25: #{tpu_custom_call.1} parent=11 // pred_check
          %p174 = pneg %p124
        $region26: #{tpu_custom_call.1} parent=11 // pred_check_branch
          %176 = sbr.rel (%p174) target = $region28
        $region27: #{tpu_custom_call.1} parent=11 // pred_region
          _
        $region28: #{tpu_custom_call.1} parent=11 // pred_fallthru
          _
      $region12: #{tpu_custom_call.1} parent=5 // pred_fallthru
        _
      %p177 = scmp.lt.s32.totalorder %s14, 2
      // Predicated region
      $region29: #{tpu_custom_call.1} parent=5 // pred_check
        %p178 = pneg %p177
      $region30: #{tpu_custom_call.1} parent=5 // pred_check_branch
        %180 = sbr.rel (%p178) target = $region32
      $region31: #{tpu_custom_call.1} parent=5 // pred_region
        // Predicated region
        $region33: #{tpu_custom_call.1} parent=31 // pred_check
          %p181 = pneg %p34
        $region34: #{tpu_custom_call.1} parent=31 // pred_check_branch
          %183 = sbr.rel (%p181) target = $region36
        $region35: #{tpu_custom_call.1} parent=31 // pred_region
          %p184 = scmp.lt.s32.totalorder %s14, 1
          %s185 = scalar_select %p184, %s14, 1
          %s186 = smul.addr %s185, 8
          %s187 = scalar_lea.vmem %s0, %s186
        $region36: #{tpu_custom_call.1} parent=31 // pred_fallthru
          _
      $region32: #{tpu_custom_call.1} parent=5 // pred_fallthru
        _
      %p188 = scmp.le.s32.totalorder 1, %s14
      %p189 = scmp.lt.s32.totalorder %s14, 3
      %p190 = pnand %p188, %p189
      %p191 = pneg %p190
      // Predicated region
      $region37: #{tpu_custom_call.1} parent=5 // pred_check
        _
      $region38: #{tpu_custom_call.1} parent=5 // pred_check_branch
        %193 = sbr.rel (%p190) target = $region40
      $region39: #{tpu_custom_call.1} parent=5 // pred_region
        %s194 = ssub.s32 %s14, 1
        %p195 = scmp.lt.s32.totalorder %s19, 1
        %s196 = scalar_select %p195, %s19, 1
        %s197 = smul.addr %s196, 8
        %s198 = scalar_lea.vmem %s0, %s197
        %p199 = pneg %p40
        %p200 = pneg %p37
        %p201 = pneg %p61
        %p202 = pneg %p58
        %p203 = pneg %p82
        %p204 = pneg %p79
        %p205 = pneg %p103
        %p206 = pneg %p100
        %p207 = pneg %p124
        %p208 = pneg %p121
        %p209 = pneg %p150
        %p210 = pneg %p147
        %s211 = sand.u32 %s137, 1
        %s212 = scalar_lea.sflag [#allocation3], %s211
        %s213 = sand.u32 %s137, 1
        %s214 = smul.addr %s213, 8
        %s215 = scalar_lea.vmem [#allocation2], %s214
        %p216 = scmp.lt.s32.totalorder %s19, 1
        %s217 = scalar_select %p216, %s19, 1
        %s218 = smul.addr %s217, 8
        %s219 = scalar_lea.vmem %s0, %s218
        %v220 = vld [vmem:[%s219] sm:$0xff]
        %v221 = vld [vmem:[%s1] sm:$0xff]
        %v222 = vld [vmem:[%s1 + $0x8] sm:$0xff]
        %v223 = vld [vmem:[%s1 + $0x10] sm:$0xff]
        %v224 = vld [vmem:[%s1 + $0x18] sm:$0xff]
        %v225 = vld [vmem:[%s1 + $0x20] sm:$0xff]
        %v226 = vld [vmem:[%s1 + $0x28] sm:$0xff]
        %v227 = vld [vmem:[%s1 + $0x30] sm:$0xff]
        %v228 = vld [vmem:[%s1 + $0x38] sm:$0xff]
        %v229 = vld [vmem:[%s1 + $0x40] sm:$0xff]
        %v230 = vld [vmem:[%s1 + $0x48] sm:$0xff]
        %v231 = vld [vmem:[%s1 + $0x50] sm:$0xff]
        %v232 = vld [vmem:[%s1 + $0x58] sm:$0xff]
        %v233 = vld [vmem:[%s1 + $0x60] sm:$0xff]
        %v234 = vld [vmem:[%s1 + $0x68] sm:$0xff]
        %v235 = vld [vmem:[%s1 + $0x70] sm:$0xff]
        %v236 = vld [vmem:[%s1 + $0x78] sm:$0xff]
        %v237 = vld [vmem:[%s1 + $0x80] sm:$0xff]
        %v238 = vld [vmem:[%s1 + $0x88] sm:$0xff]
        %v239 = vld [vmem:[%s1 + $0x90] sm:$0xff]
        %v240 = vld [vmem:[%s1 + $0x98] sm:$0xff]
        %v241 = vld [vmem:[%s1 + $0xa0] sm:$0xff]
        %v242 = vld [vmem:[%s1 + $0xa8] sm:$0xff]
        %v243 = vld [vmem:[%s1 + $0xb0] sm:$0xff]
        %v244 = vld [vmem:[%s1 + $0xb8] sm:$0xff]
        %v245 = vld [vmem:[%s1 + $0xc0] sm:$0xff]
        %v246 = vld [vmem:[%s1 + $0xc8] sm:$0xff]
        %v247 = vld [vmem:[%s1 + $0xd0] sm:$0xff]
        %v248 = vld [vmem:[%s1 + $0xd8] sm:$0xff]
        %v249 = vld [vmem:[%s1 + $0xe0] sm:$0xff]
        %v250 = vld [vmem:[%s1 + $0xe8] sm:$0xff]
        %v251 = vld [vmem:[%s1 + $0xf0] sm:$0xff]
        %v252 = vld [vmem:[%s1 + $0xf8] sm:$0xff]
        %v253 = vld [vmem:[%s1 + $0x100] sm:$0xff]
        %v254 = vld [vmem:[%s1 + $0x108] sm:$0xff]
        %v255 = vld [vmem:[%s1 + $0x110] sm:$0xff]
        %v256 = vld [vmem:[%s1 + $0x118] sm:$0xff]
        %v257 = vld [vmem:[%s1 + $0x120] sm:$0xff]
        %v258 = vld [vmem:[%s1 + $0x128] sm:$0xff]
        %v259 = vld [vmem:[%s1 + $0x130] sm:$0xff]
        %v260 = vld [vmem:[%s1 + $0x138] sm:$0xff]
        %v261 = vld [vmem:[%s1 + $0x140] sm:$0xff]
        %v262 = vld [vmem:[%s1 + $0x148] sm:$0xff]
        %v263 = vld [vmem:[%s1 + $0x150] sm:$0xff]
        %v264 = vld [vmem:[%s1 + $0x158] sm:$0xff]
        %v265 = vld [vmem:[%s1 + $0x160] sm:$0xff]
        %v266 = vld [vmem:[%s1 + $0x168] sm:$0xff]
        %v267 = vld [vmem:[%s1 + $0x170] sm:$0xff]
        %v268 = vld [vmem:[%s1 + $0x178] sm:$0xff]
        %v269 = vld [vmem:[%s2] sm:$0x1]
        %v270 = vld [vmem:[%s2 + $0x1] sm:$0x1]
        %v271 = vld [vmem:[%s2 + $0x2] sm:$0x1]
        %v272 = vld [vmem:[%s2 + $0x3] sm:$0x1]
        %v273 = vld [vmem:[%s2 + $0x4] sm:$0x1]
        %v274 = vld [vmem:[%s2 + $0x5] sm:$0x1]
        %v275 = vld [vmem:[%s2 + $0x6] sm:$0x1]
        %v276 = vld [vmem:[%s2 + $0x7] sm:$0x1]
        %v277 = vld [vmem:[%s2 + $0x8] sm:$0x1]
        %v278 = vld [vmem:[%s2 + $0x9] sm:$0x1]
        %v279 = vld [vmem:[%s2 + $0xa] sm:$0x1]
        %v280 = vld [vmem:[%s2 + $0xb] sm:$0x1]
        %v293 = vlaneseq
        %v294 = vshrl.u32 %v293, 7
        %v295 = vsub.s32 0, %v294
        %v296 = vrot.slane %v269, %v295
        %v297 = vlaneseq
        %v298 = vshrl.u32 %v297, 7
        %v299 = vsub.s32 0, %v298
        %v300 = vrot.slane %v270, %v299
        %v301 = vlaneseq
        %v302 = vshrl.u32 %v301, 7
        %v303 = vsub.s32 0, %v302
        %v304 = vrot.slane %v271, %v303
        %v305 = vlaneseq
        %v306 = vshrl.u32 %v305, 7
        %v307 = vsub.s32 0, %v306
        %v308 = vrot.slane %v272, %v307
        %v309 = vlaneseq
        %v310 = vshrl.u32 %v309, 7
        %v311 = vsub.s32 0, %v310
        %v312 = vrot.slane %v273, %v311
        %v313 = vlaneseq
        %v314 = vshrl.u32 %v313, 7
        %v315 = vsub.s32 0, %v314
        %v316 = vrot.slane %v274, %v315
        %v317 = vlaneseq
        %v318 = vshrl.u32 %v317, 7
        %v319 = vsub.s32 0, %v318
        %v320 = vrot.slane %v275, %v319
        %v321 = vlaneseq
        %v322 = vshrl.u32 %v321, 7
        %v323 = vsub.s32 0, %v322
        %v324 = vrot.slane %v276, %v323
        %v325 = vlaneseq
        %v326 = vshrl.u32 %v325, 7
        %v327 = vsub.s32 0, %v326
        %v328 = vrot.slane %v277, %v327
        %v329 = vlaneseq
        %v330 = vshrl.u32 %v329, 7
        %v331 = vsub.s32 0, %v330
        %v332 = vrot.slane %v278, %v331
        %v333 = vlaneseq
        %v334 = vshrl.u32 %v333, 7
        %v335 = vsub.s32 0, %v334
        %v336 = vrot.slane %v279, %v335
        %v337 = vlaneseq
        %v338 = vshrl.u32 %v337, 7
        %v339 = vsub.s32 0, %v338
        %v340 = vrot.slane %v280, %v339
        %vm353 = vcmask 261120
        %v355 = vsel %vm353, %v220, 0
        %357 = vmatprep.subr.mxu0 0.0
        %358 = vmatpush1.msra.mxu0 %v221
        %359 = vmatprep.subr.mxu0 0.0
        %360 = vmatpush1.msra.mxu0 %v222
        %361 = vmatprep.subr.mxu0 0.0
        %362 = vmatpush1.msra.mxu0 %v223
        %363 = vmatprep.subr.mxu0 0.0
        %364 = vmatpush1.msra.mxu0 %v224
        %365 = vmatprep.subr.mxu0 0.0
        %366 = vmatpush1.msra.mxu0 0.0
        %367 = vmatprep.subr.mxu0 0.0
        %368 = vmatpush1.msra.mxu0 0.0
        %369 = vmatprep.subr.mxu0 0.0
        %370 = vmatpush1.msra.mxu0 0.0
        %371 = vmatprep.subr.mxu0 0.0
        %372 = vmatpush1.msra.mxu0 0.0
        %373 = vmatprep.subr.mxu0 0.0
        %374 = vmatpush1.msra.mxu0 0.0
        %375 = vmatprep.subr.mxu0 0.0
        %376 = vmatpush1.msra.mxu0 0.0
        %377 = vmatprep.subr.mxu0 0.0
        %378 = vmatpush1.msra.mxu0 0.0
        %379 = vmatprep.subr.mxu0 0.0
        %380 = vmatpush1.msra.mxu0 0.0
        %381 = vmatprep.subr.mxu0 0.0
        %382 = vmatpush1.msra.mxu0 0.0
        %383 = vmatprep.subr.mxu0 0.0
        %384 = vmatpush1.msra.mxu0 0.0
        %385 = vmatprep.subr.mxu0 0.0
        %386 = vmatpush1.msra.mxu0 0.0
        %387 = vmatprep.subr.mxu0 0.0
        %388 = vmatpush1.msra.mxu0 0.0
        %389 = vmatprep.subr.mxu0 0.0
        %390 = vmatpush1.msra.mxu0 0.0
        %391 = vmatprep.subr.mxu0 0.0
        %392 = vmatpush1.msra.mxu0 0.0
        %393 = vmatprep.subr.mxu0 0.0
        %394 = vmatpush1.msra.mxu0 0.0
        %395 = vmatprep.subr.mxu0 0.0
        %396 = vmatpush1.msra.mxu0 0.0
        %397 = vmatprep.subr.mxu0 0.0
        %398 = vmatpush1.msra.mxu0 0.0
        %399 = vmatprep.subr.mxu0 0.0
        %400 = vmatpush1.msra.mxu0 0.0
        %401 = vmatprep.subr.mxu0 0.0
        %402 = vmatpush1.msra.mxu0 0.0
        %403 = vmatprep.subr.mxu0 0.0
        %404 = vmatpush1.msra.mxu0 0.0
        %405 = vmatprep.subr.mxu0 0.0
        %406 = vmatpush1.msra.mxu0 0.0
        %407 = vmatprep.subr.mxu0 0.0
        %408 = vmatpush1.msra.mxu0 0.0
        %409 = vmatprep.subr.mxu0 0.0
        %410 = vmatpush1.msra.mxu0 0.0
        %411 = vmatprep.subr.mxu0 0.0
        %412 = vmatpush1.msra.mxu0 0.0
        %413 = vmatprep.subr.mxu0 0.0
        %414 = vmatpush1.msra.mxu0 0.0
        %415 = vmatprep.subr.mxu0 0.0
        %416 = vmatpush1.msra.mxu0 0.0
        %417 = vmatprep.subr.mxu0 0.0
        %418 = vmatpush1.msra.mxu0 0.0
        %419 = vmatprep.subr.mxu0 0.0
        %420 = vmatpush1.msra.mxu0 0.0
        %421 = vmatprep.mubr.f32.mxu0 0.0
        %422 = vmatmul.mubr.f32.gmra.mrb[0].mxu0 %v355
        %v423 = vpop.f32.mrb[0].mxu0
        %v424 = vadd.f32 %v296, %v423
        %v425 = vpop.f32.mrb[0].mxu0
        %426 = vdwg.mxu0
        %427 = vmatprep.subr.mxu0 0.0
        %428 = vmatpush1.msra.mxu0 %v225
        %429 = vmatprep.subr.mxu0 0.0
        %430 = vmatpush1.msra.mxu0 %v226
        %431 = vmatprep.subr.mxu0 0.0
        %432 = vmatpush1.msra.mxu0 %v227
        %433 = vmatprep.subr.mxu0 0.0
        %434 = vmatpush1.msra.mxu0 %v228
        %435 = vmatprep.subr.mxu0 0.0
        %436 = vmatpush1.msra.mxu0 0.0
        %437 = vmatprep.subr.mxu0 0.0
        %438 = vmatpush1.msra.mxu0 0.0
        %439 = vmatprep.subr.mxu0 0.0
        %440 = vmatpush1.msra.mxu0 0.0
        %441 = vmatprep.subr.mxu0 0.0
        %442 = vmatpush1.msra.mxu0 0.0
        %443 = vmatprep.subr.mxu0 0.0
        %444 = vmatpush1.msra.mxu0 0.0
        %445 = vmatprep.subr.mxu0 0.0
        %446 = vmatpush1.msra.mxu0 0.0
        %447 = vmatprep.subr.mxu0 0.0
        %448 = vmatpush1.msra.mxu0 0.0
        %449 = vmatprep.subr.mxu0 0.0
        %450 = vmatpush1.msra.mxu0 0.0
        %451 = vmatprep.subr.mxu0 0.0
        %452 = vmatpush1.msra.mxu0 0.0
        %453 = vmatprep.subr.mxu0 0.0
        %454 = vmatpush1.msra.mxu0 0.0
        %455 = vmatprep.subr.mxu0 0.0
        %456 = vmatpush1.msra.mxu0 0.0
        %457 = vmatprep.subr.mxu0 0.0
        %458 = vmatpush1.msra.mxu0 0.0
        %459 = vmatprep.subr.mxu0 0.0
        %460 = vmatpush1.msra.mxu0 0.0
        %461 = vmatprep.subr.mxu0 0.0
        %462 = vmatpush1.msra.mxu0 0.0
        %463 = vmatprep.subr.mxu0 0.0
        %464 = vmatpush1.msra.mxu0 0.0
        %465 = vmatprep.subr.mxu0 0.0
        %466 = vmatpush1.msra.mxu0 0.0
        %467 = vmatprep.subr.mxu0 0.0
        %468 = vmatpush1.msra.mxu0 0.0
        %469 = vmatprep.subr.mxu0 0.0
        %470 = vmatpush1.msra.mxu0 0.0
        %471 = vmatprep.subr.mxu0 0.0
        %472 = vmatpush1.msra.mxu0 0.0
        %473 = vmatprep.subr.mxu0 0.0
        %474 = vmatpush1.msra.mxu0 0.0
        %475 = vmatprep.subr.mxu0 0.0
        %476 = vmatpush1.msra.mxu0 0.0
        %477 = vmatprep.subr.mxu0 0.0
        %478 = vmatpush1.msra.mxu0 0.0
        %479 = vmatprep.subr.mxu0 0.0
        %480 = vmatpush1.msra.mxu0 0.0
        %481 = vmatprep.subr.mxu0 0.0
        %482 = vmatpush1.msra.mxu0 0.0
        %483 = vmatprep.subr.mxu0 0.0
        %484 = vmatpush1.msra.mxu0 0.0
        %485 = vmatprep.subr.mxu0 0.0
        %486 = vmatpush1.msra.mxu0 0.0
        %487 = vmatprep.subr.mxu0 0.0
        %488 = vmatpush1.msra.mxu0 0.0
        %489 = vmatprep.subr.mxu0 0.0
        %490 = vmatpush1.msra.mxu0 0.0
        %491 = vmatprep.mubr.f32.mxu0 0.0
        %492 = vmatmul.mubr.f32.gmra.mrb[0].mxu0 %v355
        %v493 = vpop.f32.mrb[0].mxu0
        %v494 = vadd.f32 %v300, %v493
        %v495 = vpop.f32.mrb[0].mxu0
        %496 = vdwg.mxu0
        %497 = vmatprep.subr.mxu0 0.0
        %498 = vmatpush1.msra.mxu0 %v229
        %499 = vmatprep.subr.mxu0 0.0
        %500 = vmatpush1.msra.mxu0 %v230
        %501 = vmatprep.subr.mxu0 0.0
        %502 = vmatpush1.msra.mxu0 %v231
        %503 = vmatprep.subr.mxu0 0.0
        %504 = vmatpush1.msra.mxu0 %v232
        %505 = vmatprep.subr.mxu0 0.0
        %506 = vmatpush1.msra.mxu0 0.0
        %507 = vmatprep.subr.mxu0 0.0
        %508 = vmatpush1.msra.mxu0 0.0
        %509 = vmatprep.subr.mxu0 0.0
        %510 = vmatpush1.msra.mxu0 0.0
        %511 = vmatprep.subr.mxu0 0.0
        %512 = vmatpush1.msra.mxu0 0.0
        %513 = vmatprep.subr.mxu0 0.0
        %514 = vmatpush1.msra.mxu0 0.0
        %515 = vmatprep.subr.mxu0 0.0
        %516 = vmatpush1.msra.mxu0 0.0
        %517 = vmatprep.subr.mxu0 0.0
        %518 = vmatpush1.msra.mxu0 0.0
        %519 = vmatprep.subr.mxu0 0.0
        %520 = vmatpush1.msra.mxu0 0.0
        %521 = vmatprep.subr.mxu0 0.0
        %522 = vmatpush1.msra.mxu0 0.0
        %523 = vmatprep.subr.mxu0 0.0
        %524 = vmatpush1.msra.mxu0 0.0
        %525 = vmatprep.subr.mxu0 0.0
        %526 = vmatpush1.msra.mxu0 0.0
        %527 = vmatprep.subr.mxu0 0.0
        %528 = vmatpush1.msra.mxu0 0.0
        %529 = vmatprep.subr.mxu0 0.0
        %530 = vmatpush1.msra.mxu0 0.0
        %531 = vmatprep.subr.mxu0 0.0
        %532 = vmatpush1.msra.mxu0 0.0
        %533 = vmatprep.subr.mxu0 0.0
        %534 = vmatpush1.msra.mxu0 0.0
        %535 = vmatprep.subr.mxu0 0.0
        %536 = vmatpush1.msra.mxu0 0.0
        %537 = vmatprep.subr.mxu0 0.0
        %538 = vmatpush1.msra.mxu0 0.0
        %539 = vmatprep.subr.mxu0 0.0
        %540 = vmatpush1.msra.mxu0 0.0
        %541 = vmatprep.subr.mxu0 0.0
        %542 = vmatpush1.msra.mxu0 0.0
        %543 = vmatprep.subr.mxu0 0.0
        %544 = vmatpush1.msra.mxu0 0.0
        %545 = vmatprep.subr.mxu0 0.0
        %546 = vmatpush1.msra.mxu0 0.0
        %547 = vmatprep.subr.mxu0 0.0
        %548 = vmatpush1.msra.mxu0 0.0
        %549 = vmatprep.subr.mxu0 0.0
        %550 = vmatpush1.msra.mxu0 0.0
        %551 = vmatprep.subr.mxu0 0.0
        %552 = vmatpush1.msra.mxu0 0.0
        %553 = vmatprep.subr.mxu0 0.0
        %554 = vmatpush1.msra.mxu0 0.0
        %555 = vmatprep.subr.mxu0 0.0
        %556 = vmatpush1.msra.mxu0 0.0
        %557 = vmatprep.subr.mxu0 0.0
        %558 = vmatpush1.msra.mxu0 0.0
        %559 = vmatprep.subr.mxu0 0.0
        %560 = vmatpush1.msra.mxu0 0.0
        %561 = vmatprep.mubr.f32.mxu0 0.0
        %562 = vmatmul.mubr.f32.gmra.mrb[0].mxu0 %v355
        %v563 = vpop.f32.mrb[0].mxu0
        %v564 = vadd.f32 %v304, %v563
        %v565 = vpop.f32.mrb[0].mxu0
        %566 = vdwg.mxu0
        %567 = vmatprep.subr.mxu0 0.0
        %568 = vmatpush1.msra.mxu0 %v233
        %569 = vmatprep.subr.mxu0 0.0
        %570 = vmatpush1.msra.mxu0 %v234
        %571 = vmatprep.subr.mxu0 0.0
        %572 = vmatpush1.msra.mxu0 %v235
        %573 = vmatprep.subr.mxu0 0.0
        %574 = vmatpush1.msra.mxu0 %v236
        %575 = vmatprep.subr.mxu0 0.0
        %576 = vmatpush1.msra.mxu0 0.0
        %577 = vmatprep.subr.mxu0 0.0
        %578 = vmatpush1.msra.mxu0 0.0
        %579 = vmatprep.subr.mxu0 0.0
        %580 = vmatpush1.msra.mxu0 0.0
        %581 = vmatprep.subr.mxu0 0.0
        %582 = vmatpush1.msra.mxu0 0.0
        %583 = vmatprep.subr.mxu0 0.0
        %584 = vmatpush1.msra.mxu0 0.0
        %585 = vmatprep.subr.mxu0 0.0
        %586 = vmatpush1.msra.mxu0 0.0
        %587 = vmatprep.subr.mxu0 0.0
        %588 = vmatpush1.msra.mxu0 0.0
        %589 = vmatprep.subr.mxu0 0.0
        %590 = vmatpush1.msra.mxu0 0.0
        %591 = vmatprep.subr.mxu0 0.0
        %592 = vmatpush1.msra.mxu0 0.0
        %593 = vmatprep.subr.mxu0 0.0
        %594 = vmatpush1.msra.mxu0 0.0
        %595 = vmatprep.subr.mxu0 0.0
        %596 = vmatpush1.msra.mxu0 0.0
        %597 = vmatprep.subr.mxu0 0.0
        %598 = vmatpush1.msra.mxu0 0.0
        %599 = vmatprep.subr.mxu0 0.0
        %600 = vmatpush1.msra.mxu0 0.0
        %601 = vmatprep.subr.mxu0 0.0
        %602 = vmatpush1.msra.mxu0 0.0
        %603 = vmatprep.subr.mxu0 0.0
        %604 = vmatpush1.msra.mxu0 0.0
        %605 = vmatprep.subr.mxu0 0.0
        %606 = vmatpush1.msra.mxu0 0.0
        %607 = vmatprep.subr.mxu0 0.0
        %608 = vmatpush1.msra.mxu0 0.0
        %609 = vmatprep.subr.mxu0 0.0
        %610 = vmatpush1.msra.mxu0 0.0
        %611 = vmatprep.subr.mxu0 0.0
        %612 = vmatpush1.msra.mxu0 0.0
        %613 = vmatprep.subr.mxu0 0.0
        %614 = vmatpush1.msra.mxu0 0.0
        %615 = vmatprep.subr.mxu0 0.0
        %616 = vmatpush1.msra.mxu0 0.0
        %617 = vmatprep.subr.mxu0 0.0
        %618 = vmatpush1.msra.mxu0 0.0
        %619 = vmatprep.subr.mxu0 0.0
        %620 = vmatpush1.msra.mxu0 0.0
        %621 = vmatprep.subr.mxu0 0.0
        %622 = vmatpush1.msra.mxu0 0.0
        %623 = vmatprep.subr.mxu0 0.0
        %624 = vmatpush1.msra.mxu0 0.0
        %625 = vmatprep.subr.mxu0 0.0
        %626 = vmatpush1.msra.mxu0 0.0
        %627 = vmatprep.subr.mxu0 0.0
        %628 = vmatpush1.msra.mxu0 0.0
        %629 = vmatprep.subr.mxu0 0.0
        %630 = vmatpush1.msra.mxu0 0.0
        %631 = vmatprep.mubr.f32.mxu0 0.0
        %632 = vmatmul.mubr.f32.gmra.mrb[0].mxu0 %v355
        %v633 = vpop.f32.mrb[0].mxu0
        %v634 = vadd.f32 %v308, %v633
        %v635 = vpop.f32.mrb[0].mxu0
        %636 = vdwg.mxu0
        %637 = vmatprep.subr.mxu0 0.0
        %638 = vmatpush1.msra.mxu0 %v237
        %639 = vmatprep.subr.mxu0 0.0
        %640 = vmatpush1.msra.mxu0 %v238
        %641 = vmatprep.subr.mxu0 0.0
        %642 = vmatpush1.msra.mxu0 %v239
        %643 = vmatprep.subr.mxu0 0.0
        %644 = vmatpush1.msra.mxu0 %v240
        %645 = vmatprep.subr.mxu0 0.0
        %646 = vmatpush1.msra.mxu0 0.0
        %647 = vmatprep.subr.mxu0 0.0
        %648 = vmatpush1.msra.mxu0 0.0
        %649 = vmatprep.subr.mxu0 0.0
        %650 = vmatpush1.msra.mxu0 0.0
        %651 = vmatprep.subr.mxu0 0.0
        %652 = vmatpush1.msra.mxu0 0.0
        %653 = vmatprep.subr.mxu0 0.0
        %654 = vmatpush1.msra.mxu0 0.0
        %655 = vmatprep.subr.mxu0 0.0
        %656 = vmatpush1.msra.mxu0 0.0
        %657 = vmatprep.subr.mxu0 0.0
        %658 = vmatpush1.msra.mxu0 0.0
        %659 = vmatprep.subr.mxu0 0.0
        %660 = vmatpush1.msra.mxu0 0.0
        %661 = vmatprep.subr.mxu0 0.0
        %662 = vmatpush1.msra.mxu0 0.0
        %663 = vmatprep.subr.mxu0 0.0
        %664 = vmatpush1.msra.mxu0 0.0
        %665 = vmatprep.subr.mxu0 0.0
        %666 = vmatpush1.msra.mxu0 0.0
        %667 = vmatprep.subr.mxu0 0.0
        %668 = vmatpush1.msra.mxu0 0.0
        %669 = vmatprep.subr.mxu0 0.0
        %670 = vmatpush1.msra.mxu0 0.0
        %671 = vmatprep.subr.mxu0 0.0
        %672 = vmatpush1.msra.mxu0 0.0
        %673 = vmatprep.subr.mxu0 0.0
        %674 = vmatpush1.msra.mxu0 0.0
        %675 = vmatprep.subr.mxu0 0.0
        %676 = vmatpush1.msra.mxu0 0.0
        %677 = vmatprep.subr.mxu0 0.0
        %678 = vmatpush1.msra.mxu0 0.0
        %679 = vmatprep.subr.mxu0 0.0
        %680 = vmatpush1.msra.mxu0 0.0
        %681 = vmatprep.subr.mxu0 0.0
        %682 = vmatpush1.msra.mxu0 0.0
        %683 = vmatprep.subr.mxu0 0.0
        %684 = vmatpush1.msra.mxu0 0.0
        %685 = vmatprep.subr.mxu0 0.0
        %686 = vmatpush1.msra.mxu0 0.0
        %687 = vmatprep.subr.mxu0 0.0
        %688 = vmatpush1.msra.mxu0 0.0
        %689 = vmatprep.subr.mxu0 0.0
        %690 = vmatpush1.msra.mxu0 0.0
        %691 = vmatprep.subr.mxu0 0.0
        %692 = vmatpush1.msra.mxu0 0.0
        %693 = vmatprep.subr.mxu0 0.0
        %694 = vmatpush1.msra.mxu0 0.0
        %695 = vmatprep.subr.mxu0 0.0
        %696 = vmatpush1.msra.mxu0 0.0
        %697 = vmatprep.subr.mxu0 0.0
        %698 = vmatpush1.msra.mxu0 0.0
        %699 = vmatprep.subr.mxu0 0.0
        %700 = vmatpush1.msra.mxu0 0.0
        %701 = vmatprep.mubr.f32.mxu0 0.0
        %702 = vmatmul.mubr.f32.gmra.mrb[0].mxu0 %v355
        %v703 = vpop.f32.mrb[0].mxu0
        %v704 = vadd.f32 %v312, %v703
        %v705 = vpop.f32.mrb[0].mxu0
        %706 = vdwg.mxu0
        %707 = vmatprep.subr.mxu0 0.0
        %708 = vmatpush1.msra.mxu0 %v241
        %709 = vmatprep.subr.mxu0 0.0
        %710 = vmatpush1.msra.mxu0 %v242
        %711 = vmatprep.subr.mxu0 0.0
        %712 = vmatpush1.msra.mxu0 %v243
        %713 = vmatprep.subr.mxu0 0.0
        %714 = vmatpush1.msra.mxu0 %v244
        %715 = vmatprep.subr.mxu0 0.0
        %716 = vmatpush1.msra.mxu0 0.0
        %717 = vmatprep.subr.mxu0 0.0
        %718 = vmatpush1.msra.mxu0 0.0
        %719 = vmatprep.subr.mxu0 0.0
        %720 = vmatpush1.msra.mxu0 0.0
        %721 = vmatprep.subr.mxu0 0.0
        %722 = vmatpush1.msra.mxu0 0.0
        %723 = vmatprep.subr.mxu0 0.0
        %724 = vmatpush1.msra.mxu0 0.0
        %725 = vmatprep.subr.mxu0 0.0
        %726 = vmatpush1.msra.mxu0 0.0
        %727 = vmatprep.subr.mxu0 0.0
        %728 = vmatpush1.msra.mxu0 0.0
        %729 = vmatprep.subr.mxu0 0.0
        %730 = vmatpush1.msra.mxu0 0.0
        %731 = vmatprep.subr.mxu0 0.0
        %732 = vmatpush1.msra.mxu0 0.0
        %733 = vmatprep.subr.mxu0 0.0
        %734 = vmatpush1.msra.mxu0 0.0
        %735 = vmatprep.subr.mxu0 0.0
        %736 = vmatpush1.msra.mxu0 0.0
        %737 = vmatprep.subr.mxu0 0.0
        %738 = vmatpush1.msra.mxu0 0.0
        %739 = vmatprep.subr.mxu0 0.0
        %740 = vmatpush1.msra.mxu0 0.0
        %741 = vmatprep.subr.mxu0 0.0
        %742 = vmatpush1.msra.mxu0 0.0
        %743 = vmatprep.subr.mxu0 0.0
        %744 = vmatpush1.msra.mxu0 0.0
        %745 = vmatprep.subr.mxu0 0.0
        %746 = vmatpush1.msra.mxu0 0.0
        %747 = vmatprep.subr.mxu0 0.0
        %748 = vmatpush1.msra.mxu0 0.0
        %749 = vmatprep.subr.mxu0 0.0
        %750 = vmatpush1.msra.mxu0 0.0
        %751 = vmatprep.subr.mxu0 0.0
        %752 = vmatpush1.msra.mxu0 0.0
        %753 = vmatprep.subr.mxu0 0.0
        %754 = vmatpush1.msra.mxu0 0.0
        %755 = vmatprep.subr.mxu0 0.0
        %756 = vmatpush1.msra.mxu0 0.0
        %757 = vmatprep.subr.mxu0 0.0
        %758 = vmatpush1.msra.mxu0 0.0
        %759 = vmatprep.subr.mxu0 0.0
        %760 = vmatpush1.msra.mxu0 0.0
        %761 = vmatprep.subr.mxu0 0.0
        %762 = vmatpush1.msra.mxu0 0.0
        %763 = vmatprep.subr.mxu0 0.0
        %764 = vmatpush1.msra.mxu0 0.0
        %765 = vmatprep.subr.mxu0 0.0
        %766 = vmatpush1.msra.mxu0 0.0
        %767 = vmatprep.subr.mxu0 0.0
        %768 = vmatpush1.msra.mxu0 0.0
        %769 = vmatprep.subr.mxu0 0.0
        %770 = vmatpush1.msra.mxu0 0.0
        %771 = vmatprep.mubr.f32.mxu0 0.0
        %772 = vmatmul.mubr.f32.gmra.mrb[0].mxu0 %v355
        %v773 = vpop.f32.mrb[0].mxu0
        %v774 = vadd.f32 %v316, %v773
        %v775 = vpop.f32.mrb[0].mxu0
        %776 = vdwg.mxu0
        %777 = vmatprep.subr.mxu0 0.0
        %778 = vmatpush1.msra.mxu0 %v245
        %779 = vmatprep.subr.mxu0 0.0
        %780 = vmatpush1.msra.mxu0 %v246
        %781 = vmatprep.subr.mxu0 0.0
        %782 = vmatpush1.msra.mxu0 %v247
        %783 = vmatprep.subr.mxu0 0.0
        %784 = vmatpush1.msra.mxu0 %v248
        %785 = vmatprep.subr.mxu0 0.0
        %786 = vmatpush1.msra.mxu0 0.0
        %787 = vmatprep.subr.mxu0 0.0
        %788 = vmatpush1.msra.mxu0 0.0
        %789 = vmatprep.subr.mxu0 0.0
        %790 = vmatpush1.msra.mxu0 0.0
        %791 = vmatprep.subr.mxu0 0.0
        %792 = vmatpush1.msra.mxu0 0.0
        %793 = vmatprep.subr.mxu0 0.0
        %794 = vmatpush1.msra.mxu0 0.0
        %795 = vmatprep.subr.mxu0 0.0
        %796 = vmatpush1.msra.mxu0 0.0
        %797 = vmatprep.subr.mxu0 0.0
        %798 = vmatpush1.msra.mxu0 0.0
        %799 = vmatprep.subr.mxu0 0.0
        %800 = vmatpush1.msra.mxu0 0.0
        %801 = vmatprep.subr.mxu0 0.0
        %802 = vmatpush1.msra.mxu0 0.0
        %803 = vmatprep.subr.mxu0 0.0
        %804 = vmatpush1.msra.mxu0 0.0
        %805 = vmatprep.subr.mxu0 0.0
        %806 = vmatpush1.msra.mxu0 0.0
        %807 = vmatprep.subr.mxu0 0.0
        %808 = vmatpush1.msra.mxu0 0.0
        %809 = vmatprep.subr.mxu0 0.0
        %810 = vmatpush1.msra.mxu0 0.0
        %811 = vmatprep.subr.mxu0 0.0
        %812 = vmatpush1.msra.mxu0 0.0
        %813 = vmatprep.subr.mxu0 0.0
        %814 = vmatpush1.msra.mxu0 0.0
        %815 = vmatprep.subr.mxu0 0.0
        %816 = vmatpush1.msra.mxu0 0.0
        %817 = vmatprep.subr.mxu0 0.0
        %818 = vmatpush1.msra.mxu0 0.0
        %819 = vmatprep.subr.mxu0 0.0
        %820 = vmatpush1.msra.mxu0 0.0
        %821 = vmatprep.subr.mxu0 0.0
        %822 = vmatpush1.msra.mxu0 0.0
        %823 = vmatprep.subr.mxu0 0.0
        %824 = vmatpush1.msra.mxu0 0.0
        %825 = vmatprep.subr.mxu0 0.0
        %826 = vmatpush1.msra.mxu0 0.0
        %827 = vmatprep.subr.mxu0 0.0
        %828 = vmatpush1.msra.mxu0 0.0
        %829 = vmatprep.subr.mxu0 0.0
        %830 = vmatpush1.msra.mxu0 0.0
        %831 = vmatprep.subr.mxu0 0.0
        %832 = vmatpush1.msra.mxu0 0.0
        %833 = vmatprep.subr.mxu0 0.0
        %834 = vmatpush1.msra.mxu0 0.0
        %835 = vmatprep.subr.mxu0 0.0
        %836 = vmatpush1.msra.mxu0 0.0
        %837 = vmatprep.subr.mxu0 0.0
        %838 = vmatpush1.msra.mxu0 0.0
        %839 = vmatprep.subr.mxu0 0.0
        %840 = vmatpush1.msra.mxu0 0.0
        %841 = vmatprep.mubr.f32.mxu0 0.0
        %842 = vmatmul.mubr.f32.gmra.mrb[0].mxu0 %v355
        %v843 = vpop.f32.mrb[0].mxu0
        %v844 = vadd.f32 %v320, %v843
        %v845 = vpop.f32.mrb[0].mxu0
        %846 = vdwg.mxu0
        %847 = vmatprep.subr.mxu0 0.0
        %848 = vmatpush1.msra.mxu0 %v249
        %849 = vmatprep.subr.mxu0 0.0
        %850 = vmatpush1.msra.mxu0 %v250
        %851 = vmatprep.subr.mxu0 0.0
        %852 = vmatpush1.msra.mxu0 %v251
        %853 = vmatprep.subr.mxu0 0.0
        %854 = vmatpush1.msra.mxu0 %v252
        %855 = vmatprep.subr.mxu0 0.0
        %856 = vmatpush1.msra.mxu0 0.0
        %857 = vmatprep.subr.mxu0 0.0
        %858 = vmatpush1.msra.mxu0 0.0
        %859 = vmatprep.subr.mxu0 0.0
        %860 = vmatpush1.msra.mxu0 0.0
        %861 = vmatprep.subr.mxu0 0.0
        %862 = vmatpush1.msra.mxu0 0.0
        %863 = vmatprep.subr.mxu0 0.0
        %864 = vmatpush1.msra.mxu0 0.0
        %865 = vmatprep.subr.mxu0 0.0
        %866 = vmatpush1.msra.mxu0 0.0
        %867 = vmatprep.subr.mxu0 0.0
        %868 = vmatpush1.msra.mxu0 0.0
        %869 = vmatprep.subr.mxu0 0.0
        %870 = vmatpush1.msra.mxu0 0.0
        %871 = vmatprep.subr.mxu0 0.0
        %872 = vmatpush1.msra.mxu0 0.0
        %873 = vmatprep.subr.mxu0 0.0
        %874 = vmatpush1.msra.mxu0 0.0
        %875 = vmatprep.subr.mxu0 0.0
        %876 = vmatpush1.msra.mxu0 0.0
        %877 = vmatprep.subr.mxu0 0.0
        %878 = vmatpush1.msra.mxu0 0.0
        %879 = vmatprep.subr.mxu0 0.0
        %880 = vmatpush1.msra.mxu0 0.0
        %881 = vmatprep.subr.mxu0 0.0
        %882 = vmatpush1.msra.mxu0 0.0
        %883 = vmatprep.subr.mxu0 0.0
        %884 = vmatpush1.msra.mxu0 0.0
        %885 = vmatprep.subr.mxu0 0.0
        %886 = vmatpush1.msra.mxu0 0.0
        %887 = vmatprep.subr.mxu0 0.0
        %888 = vmatpush1.msra.mxu0 0.0
        %889 = vmatprep.subr.mxu0 0.0
        %890 = vmatpush1.msra.mxu0 0.0
        %891 = vmatprep.subr.mxu0 0.0
        %892 = vmatpush1.msra.mxu0 0.0
        %893 = vmatprep.subr.mxu0 0.0
        %894 = vmatpush1.msra.mxu0 0.0
        %895 = vmatprep.subr.mxu0 0.0
        %896 = vmatpush1.msra.mxu0 0.0
        %897 = vmatprep.subr.mxu0 0.0
        %898 = vmatpush1.msra.mxu0 0.0
        %899 = vmatprep.subr.mxu0 0.0
        %900 = vmatpush1.msra.mxu0 0.0
        %901 = vmatprep.subr.mxu0 0.0
        %902 = vmatpush1.msra.mxu0 0.0
        %903 = vmatprep.subr.mxu0 0.0
        %904 = vmatpush1.msra.mxu0 0.0
        %905 = vmatprep.subr.mxu0 0.0
        %906 = vmatpush1.msra.mxu0 0.0
        %907 = vmatprep.subr.mxu0 0.0
        %908 = vmatpush1.msra.mxu0 0.0
        %909 = vmatprep.subr.mxu0 0.0
        %910 = vmatpush1.msra.mxu0 0.0
        %911 = vmatprep.mubr.f32.mxu0 0.0
        %912 = vmatmul.mubr.f32.gmra.mrb[0].mxu0 %v355
        %v913 = vpop.f32.mrb[0].mxu0
        %v914 = vadd.f32 %v324, %v913
        %v915 = vpop.f32.mrb[0].mxu0
        %916 = vdwg.mxu0
        %917 = vmatprep.subr.mxu0 0.0
        %918 = vmatpush1.msra.mxu0 %v253
        %919 = vmatprep.subr.mxu0 0.0
        %920 = vmatpush1.msra.mxu0 %v254
        %921 = vmatprep.subr.mxu0 0.0
        %922 = vmatpush1.msra.mxu0 %v255
        %923 = vmatprep.subr.mxu0 0.0
        %924 = vmatpush1.msra.mxu0 %v256
        %925 = vmatprep.subr.mxu0 0.0
        %926 = vmatpush1.msra.mxu0 0.0
        %927 = vmatprep.subr.mxu0 0.0
        %928 = vmatpush1.msra.mxu0 0.0
        %929 = vmatprep.subr.mxu0 0.0
        %930 = vmatpush1.msra.mxu0 0.0
        %931 = vmatprep.subr.mxu0 0.0
        %932 = vmatpush1.msra.mxu0 0.0
        %933 = vmatprep.subr.mxu0 0.0
        %934 = vmatpush1.msra.mxu0 0.0
        %935 = vmatprep.subr.mxu0 0.0
        %936 = vmatpush1.msra.mxu0 0.0
        %937 = vmatprep.subr.mxu0 0.0
        %938 = vmatpush1.msra.mxu0 0.0
        %939 = vmatprep.subr.mxu0 0.0
        %940 = vmatpush1.msra.mxu0 0.0
        %941 = vmatprep.subr.mxu0 0.0
        %942 = vmatpush1.msra.mxu0 0.0
        %943 = vmatprep.subr.mxu0 0.0
        %944 = vmatpush1.msra.mxu0 0.0
        %945 = vmatprep.subr.mxu0 0.0
        %946 = vmatpush1.msra.mxu0 0.0
        %947 = vmatprep.subr.mxu0 0.0
        %948 = vmatpush1.msra.mxu0 0.0
        %949 = vmatprep.subr.mxu0 0.0
        %950 = vmatpush1.msra.mxu0 0.0
        %951 = vmatprep.subr.mxu0 0.0
        %952 = vmatpush1.msra.mxu0 0.0
        %953 = vmatprep.subr.mxu0 0.0
        %954 = vmatpush1.msra.mxu0 0.0
        %955 = vmatprep.subr.mxu0 0.0
        %956 = vmatpush1.msra.mxu0 0.0
        %957 = vmatprep.subr.mxu0 0.0
        %958 = vmatpush1.msra.mxu0 0.0
        %959 = vmatprep.subr.mxu0 0.0
        %960 = vmatpush1.msra.mxu0 0.0
        %961 = vmatprep.subr.mxu0 0.0
        %962 = vmatpush1.msra.mxu0 0.0
        %963 = vmatprep.subr.mxu0 0.0
        %964 = vmatpush1.msra.mxu0 0.0
        %965 = vmatprep.subr.mxu0 0.0
        %966 = vmatpush1.msra.mxu0 0.0
        %967 = vmatprep.subr.mxu0 0.0
        %968 = vmatpush1.msra.mxu0 0.0
        %969 = vmatprep.subr.mxu0 0.0
        %970 = vmatpush1.msra.mxu0 0.0
        %971 = vmatprep.subr.mxu0 0.0
        %972 = vmatpush1.msra.mxu0 0.0
        %973 = vmatprep.subr.mxu0 0.0
        %974 = vmatpush1.msra.mxu0 0.0
        %975 = vmatprep.subr.mxu0 0.0
        %976 = vmatpush1.msra.mxu0 0.0
        %977 = vmatprep.subr.mxu0 0.0
        %978 = vmatpush1.msra.mxu0 0.0
        %979 = vmatprep.subr.mxu0 0.0
        %980 = vmatpush1.msra.mxu0 0.0
        %981 = vmatprep.mubr.f32.mxu0 0.0
        %982 = vmatmul.mubr.f32.gmra.mrb[0].mxu0 %v355
        %v983 = vpop.f32.mrb[0].mxu0
        %v984 = vadd.f32 %v328, %v983
        %v985 = vpop.f32.mrb[0].mxu0
        %986 = vdwg.mxu0
        %987 = vmatprep.subr.mxu0 0.0
        %988 = vmatpush1.msra.mxu0 %v257
        %989 = vmatprep.subr.mxu0 0.0
        %990 = vmatpush1.msra.mxu0 %v258
        %991 = vmatprep.subr.mxu0 0.0
        %992 = vmatpush1.msra.mxu0 %v259
        %993 = vmatprep.subr.mxu0 0.0
        %994 = vmatpush1.msra.mxu0 %v260
        %995 = vmatprep.subr.mxu0 0.0
        %996 = vmatpush1.msra.mxu0 0.0
        %997 = vmatprep.subr.mxu0 0.0
        %998 = vmatpush1.msra.mxu0 0.0
        %999 = vmatprep.subr.mxu0 0.0
        %1000 = vmatpush1.msra.mxu0 0.0
        %1001 = vmatprep.subr.mxu0 0.0
        %1002 = vmatpush1.msra.mxu0 0.0
        %1003 = vmatprep.subr.mxu0 0.0
        %1004 = vmatpush1.msra.mxu0 0.0
        %1005 = vmatprep.subr.mxu0 0.0
        %1006 = vmatpush1.msra.mxu0 0.0
        %1007 = vmatprep.subr.mxu0 0.0
        %1008 = vmatpush1.msra.mxu0 0.0
        %1009 = vmatprep.subr.mxu0 0.0
        %1010 = vmatpush1.msra.mxu0 0.0
        %1011 = vmatprep.subr.mxu0 0.0
        %1012 = vmatpush1.msra.mxu0 0.0
        %1013 = vmatprep.subr.mxu0 0.0
        %1014 = vmatpush1.msra.mxu0 0.0
        %1015 = vmatprep.subr.mxu0 0.0
        %1016 = vmatpush1.msra.mxu0 0.0
        %1017 = vmatprep.subr.mxu0 0.0
        %1018 = vmatpush1.msra.mxu0 0.0
        %1019 = vmatprep.subr.mxu0 0.0
        %1020 = vmatpush1.msra.mxu0 0.0
        %1021 = vmatprep.subr.mxu0 0.0
        %1022 = vmatpush1.msra.mxu0 0.0
        %1023 = vmatprep.subr.mxu0 0.0
        %1024 = vmatpush1.msra.mxu0 0.0
        %1025 = vmatprep.subr.mxu0 0.0
        %1026 = vmatpush1.msra.mxu0 0.0
        %1027 = vmatprep.subr.mxu0 0.0
        %1028 = vmatpush1.msra.mxu0 0.0
        %1029 = vmatprep.subr.mxu0 0.0
        %1030 = vmatpush1.msra.mxu0 0.0
        %1031 = vmatprep.subr.mxu0 0.0
        %1032 = vmatpush1.msra.mxu0 0.0
        %1033 = vmatprep.subr.mxu0 0.0
        %1034 = vmatpush1.msra.mxu0 0.0
        %1035 = vmatprep.subr.mxu0 0.0
        %1036 = vmatpush1.msra.mxu0 0.0
        %1037 = vmatprep.subr.mxu0 0.0
        %1038 = vmatpush1.msra.mxu0 0.0
        %1039 = vmatprep.subr.mxu0 0.0
        %1040 = vmatpush1.msra.mxu0 0.0
        %1041 = vmatprep.subr.mxu0 0.0
        %1042 = vmatpush1.msra.mxu0 0.0
        %1043 = vmatprep.subr.mxu0 0.0
        %1044 = vmatpush1.msra.mxu0 0.0
        %1045 = vmatprep.subr.mxu0 0.0
        %1046 = vmatpush1.msra.mxu0 0.0
        %1047 = vmatprep.subr.mxu0 0.0
        %1048 = vmatpush1.msra.mxu0 0.0
        %1049 = vmatprep.subr.mxu0 0.0
        %1050 = vmatpush1.msra.mxu0 0.0
        %1051 = vmatprep.mubr.f32.mxu0 0.0
        %1052 = vmatmul.mubr.f32.gmra.mrb[0].mxu0 %v355
        %v1053 = vpop.f32.mrb[0].mxu0
        %v1054 = vadd.f32 %v332, %v1053
        %v1055 = vpop.f32.mrb[0].mxu0
        %1056 = vdwg.mxu0
        %1057 = vmatprep.subr.mxu0 0.0
        %1058 = vmatpush1.msra.mxu0 %v261
        %1059 = vmatprep.subr.mxu0 0.0
        %1060 = vmatpush1.msra.mxu0 %v262
        %1061 = vmatprep.subr.mxu0 0.0
        %1062 = vmatpush1.msra.mxu0 %v263
        %1063 = vmatprep.subr.mxu0 0.0
        %1064 = vmatpush1.msra.mxu0 %v264
        %1065 = vmatprep.subr.mxu0 0.0
        %1066 = vmatpush1.msra.mxu0 0.0
        %1067 = vmatprep.subr.mxu0 0.0
        %1068 = vmatpush1.msra.mxu0 0.0
        %1069 = vmatprep.subr.mxu0 0.0
        %1070 = vmatpush1.msra.mxu0 0.0
        %1071 = vmatprep.subr.mxu0 0.0
        %1072 = vmatpush1.msra.mxu0 0.0
        %1073 = vmatprep.subr.mxu0 0.0
        %1074 = vmatpush1.msra.mxu0 0.0
        %1075 = vmatprep.subr.mxu0 0.0
        %1076 = vmatpush1.msra.mxu0 0.0
        %1077 = vmatprep.subr.mxu0 0.0
        %1078 = vmatpush1.msra.mxu0 0.0
        %1079 = vmatprep.subr.mxu0 0.0
        %1080 = vmatpush1.msra.mxu0 0.0
        %1081 = vmatprep.subr.mxu0 0.0
        %1082 = vmatpush1.msra.mxu0 0.0
        %1083 = vmatprep.subr.mxu0 0.0
        %1084 = vmatpush1.msra.mxu0 0.0
        %1085 = vmatprep.subr.mxu0 0.0
        %1086 = vmatpush1.msra.mxu0 0.0
        %1087 = vmatprep.subr.mxu0 0.0
        %1088 = vmatpush1.msra.mxu0 0.0
        %1089 = vmatprep.subr.mxu0 0.0
        %1090 = vmatpush1.msra.mxu0 0.0
        %1091 = vmatprep.subr.mxu0 0.0
        %1092 = vmatpush1.msra.mxu0 0.0
        %1093 = vmatprep.subr.mxu0 0.0
        %1094 = vmatpush1.msra.mxu0 0.0
        %1095 = vmatprep.subr.mxu0 0.0
        %1096 = vmatpush1.msra.mxu0 0.0
        %1097 = vmatprep.subr.mxu0 0.0
        %1098 = vmatpush1.msra.mxu0 0.0
        %1099 = vmatprep.subr.mxu0 0.0
        %1100 = vmatpush1.msra.mxu0 0.0
        %1101 = vmatprep.subr.mxu0 0.0
        %1102 = vmatpush1.msra.mxu0 0.0
        %1103 = vmatprep.subr.mxu0 0.0
        %1104 = vmatpush1.msra.mxu0 0.0
        %1105 = vmatprep.subr.mxu0 0.0
        %1106 = vmatpush1.msra.mxu0 0.0
        %1107 = vmatprep.subr.mxu0 0.0
        %1108 = vmatpush1.msra.mxu0 0.0
        %1109 = vmatprep.subr.mxu0 0.0
        %1110 = vmatpush1.msra.mxu0 0.0
        %1111 = vmatprep.subr.mxu0 0.0
        %1112 = vmatpush1.msra.mxu0 0.0
        %1113 = vmatprep.subr.mxu0 0.0
        %1114 = vmatpush1.msra.mxu0 0.0
        %1115 = vmatprep.subr.mxu0 0.0
        %1116 = vmatpush1.msra.mxu0 0.0
        %1117 = vmatprep.subr.mxu0 0.0
        %1118 = vmatpush1.msra.mxu0 0.0
        %1119 = vmatprep.subr.mxu0 0.0
        %1120 = vmatpush1.msra.mxu0 0.0
        %1121 = vmatprep.mubr.f32.mxu0 0.0
        %1122 = vmatmul.mubr.f32.gmra.mrb[0].mxu0 %v355
        %v1123 = vpop.f32.mrb[0].mxu0
        %v1124 = vadd.f32 %v336, %v1123
        %v1125 = vpop.f32.mrb[0].mxu0
        %1126 = vdwg.mxu0
        %1127 = vmatprep.subr.mxu0 0.0
        %1128 = vmatpush1.msra.mxu0 %v265
        %1129 = vmatprep.subr.mxu0 0.0
        %1130 = vmatpush1.msra.mxu0 %v266
        %1131 = vmatprep.subr.mxu0 0.0
        %1132 = vmatpush1.msra.mxu0 %v267
        %1133 = vmatprep.subr.mxu0 0.0
        %1134 = vmatpush1.msra.mxu0 %v268
        %1135 = vmatprep.subr.mxu0 0.0
        %1136 = vmatpush1.msra.mxu0 0.0
        %1137 = vmatprep.subr.mxu0 0.0
        %1138 = vmatpush1.msra.mxu0 0.0
        %1139 = vmatprep.subr.mxu0 0.0
        %1140 = vmatpush1.msra.mxu0 0.0
        %1141 = vmatprep.subr.mxu0 0.0
        %1142 = vmatpush1.msra.mxu0 0.0
        %1143 = vmatprep.subr.mxu0 0.0
        %1144 = vmatpush1.msra.mxu0 0.0
        %1145 = vmatprep.subr.mxu0 0.0
        %1146 = vmatpush1.msra.mxu0 0.0
        %1147 = vmatprep.subr.mxu0 0.0
        %1148 = vmatpush1.msra.mxu0 0.0
        %1149 = vmatprep.subr.mxu0 0.0
        %1150 = vmatpush1.msra.mxu0 0.0
        %1151 = vmatprep.subr.mxu0 0.0
        %1152 = vmatpush1.msra.mxu0 0.0
        %1153 = vmatprep.subr.mxu0 0.0
        %1154 = vmatpush1.msra.mxu0 0.0
        %1155 = vmatprep.subr.mxu0 0.0
        %1156 = vmatpush1.msra.mxu0 0.0
        %1157 = vmatprep.subr.mxu0 0.0
        %1158 = vmatpush1.msra.mxu0 0.0
        %1159 = vmatprep.subr.mxu0 0.0
        %1160 = vmatpush1.msra.mxu0 0.0
        %1161 = vmatprep.subr.mxu0 0.0
        %1162 = vmatpush1.msra.mxu0 0.0
        %1163 = vmatprep.subr.mxu0 0.0
        %1164 = vmatpush1.msra.mxu0 0.0
        %1165 = vmatprep.subr.mxu0 0.0
        %1166 = vmatpush1.msra.mxu0 0.0
        %1167 = vmatprep.subr.mxu0 0.0
        %1168 = vmatpush1.msra.mxu0 0.0
        %1169 = vmatprep.subr.mxu0 0.0
        %1170 = vmatpush1.msra.mxu0 0.0
        %1171 = vmatprep.subr.mxu0 0.0
        %1172 = vmatpush1.msra.mxu0 0.0
        %1173 = vmatprep.subr.mxu0 0.0
        %1174 = vmatpush1.msra.mxu0 0.0
        %1175 = vmatprep.subr.mxu0 0.0
        %1176 = vmatpush1.msra.mxu0 0.0
        %1177 = vmatprep.subr.mxu0 0.0
        %1178 = vmatpush1.msra.mxu0 0.0
        %1179 = vmatprep.subr.mxu0 0.0
        %1180 = vmatpush1.msra.mxu0 0.0
        %1181 = vmatprep.subr.mxu0 0.0
        %1182 = vmatpush1.msra.mxu0 0.0
        %1183 = vmatprep.subr.mxu0 0.0
        %1184 = vmatpush1.msra.mxu0 0.0
        %1185 = vmatprep.subr.mxu0 0.0
        %1186 = vmatpush1.msra.mxu0 0.0
        %1187 = vmatprep.subr.mxu0 0.0
        %1188 = vmatpush1.msra.mxu0 0.0
        %1189 = vmatprep.subr.mxu0 0.0
        %1190 = vmatpush1.msra.mxu0 0.0
        %1191 = vmatprep.mubr.f32.mxu0 0.0
        %1192 = vmatmul.mubr.f32.gmra.mrb[0].mxu0 %v355
        %v1193 = vpop.f32.mrb[0].mxu0
        %v1194 = vadd.f32 %v340, %v1193
        %v1195 = vpop.f32.mrb[0].mxu0
        %1196 = vdwg.mxu0
        %vm1197 = vcmask 64512
        %v1199 = vsel %vm1197, %v424, 0
        %v1202 = vsel %vm1197, %v704, 0
        %1204 = vmatprep.subr.mxu0 0.0
        %1205 = vmatpush1.xpose.msra.mxu0 %v1202
        %1206 = vmatprep.subr.mxu0 0.0
        %1207 = vmatpush1.xpose.msra.mxu0 0.0
        %1208 = vmatprep.subr.mxu0 0.0
        %1209 = vmatpush1.xpose.msra.mxu0 0.0
        %1210 = vmatprep.subr.mxu0 0.0
        %1211 = vmatpush1.xpose.msra.mxu0 0.0
        %1212 = vmatprep.subr.mxu0 0.0
        %1213 = vmatpush1.xpose.msra.mxu0 0.0
        %1214 = vmatprep.subr.mxu0 0.0
        %1215 = vmatpush1.xpose.msra.mxu0 0.0
        %1216 = vmatprep.subr.mxu0 0.0
        %1217 = vmatpush1.xpose.msra.mxu0 0.0
        %1218 = vmatprep.subr.mxu0 0.0
        %1219 = vmatpush1.xpose.msra.mxu0 0.0
        %1220 = vmatprep.subr.mxu0 0.0
        %1221 = vmatpush1.xpose.msra.mxu0 0.0
        %1222 = vmatprep.subr.mxu0 0.0
        %1223 = vmatpush1.xpose.msra.mxu0 0.0
        %1224 = vmatprep.subr.mxu0 0.0
        %1225 = vmatpush1.xpose.msra.mxu0 0.0
        %1226 = vmatprep.subr.mxu0 0.0
        %1227 = vmatpush1.xpose.msra.mxu0 0.0
        %1228 = vmatprep.subr.mxu0 0.0
        %1229 = vmatpush1.xpose.msra.mxu0 0.0
        %1230 = vmatprep.subr.mxu0 0.0
        %1231 = vmatpush1.xpose.msra.mxu0 0.0
        %1232 = vmatprep.subr.mxu0 0.0
        %1233 = vmatpush1.xpose.msra.mxu0 0.0
        %1234 = vmatprep.subr.mxu0 0.0
        %1235 = vmatpush1.xpose.msra.mxu0 0.0
        %1236 = vmatprep.subr.mxu0 0.0
        %1237 = vmatpush1.xpose.msra.mxu0 0.0
        %1238 = vmatprep.subr.mxu0 0.0
        %1239 = vmatpush1.xpose.msra.mxu0 0.0
        %1240 = vmatprep.subr.mxu0 0.0
        %1241 = vmatpush1.xpose.msra.mxu0 0.0
        %1242 = vmatprep.subr.mxu0 0.0
        %1243 = vmatpush1.xpose.msra.mxu0 0.0
        %1244 = vmatprep.subr.mxu0 0.0
        %1245 = vmatpush1.xpose.msra.mxu0 0.0
        %1246 = vmatprep.subr.mxu0 0.0
        %1247 = vmatpush1.xpose.msra.mxu0 0.0
        %1248 = vmatprep.subr.mxu0 0.0
        %1249 = vmatpush1.xpose.msra.mxu0 0.0
        %1250 = vmatprep.subr.mxu0 0.0
        %1251 = vmatpush1.xpose.msra.mxu0 0.0
        %1252 = vmatprep.subr.mxu0 0.0
        %1253 = vmatpush1.xpose.msra.mxu0 0.0
        %1254 = vmatprep.subr.mxu0 0.0
        %1255 = vmatpush1.xpose.msra.mxu0 0.0
        %1256 = vmatprep.subr.mxu0 0.0
        %1257 = vmatpush1.xpose.msra.mxu0 0.0
        %1258 = vmatprep.subr.mxu0 0.0
        %1259 = vmatpush1.xpose.msra.mxu0 0.0
        %1260 = vmatprep.subr.mxu0 0.0
        %1261 = vmatpush1.xpose.msra.mxu0 0.0
        %1262 = vmatprep.subr.mxu0 0.0
        %1263 = vmatpush1.xpose.msra.mxu0 0.0
        %1264 = vmatprep.subr.mxu0 0.0
        %1265 = vmatpush1.xpose.msra.mxu0 0.0
        %1266 = vmatprep.subr.mxu0 0.0
        %1267 = vmatpush1.xpose.msra.mxu0 0.0
        %1268 = vmatprep.mubr.f32.mxu0 0.0
        %1269 = vmatmul.mubr.f32.gmra.mrb[0].mxu0 %v1199
        %v1270 = vpop.f32.mrb[0].mxu0
        %v1271 = vadd.f32 0.0, %v1270
        %v1272 = vpop.f32.mrb[0].mxu0
        %1273 = vdwg.mxu0
        %v1275 = vsel %vm1197, %v494, 0
        %v1278 = vsel %vm1197, %v774, 0
        %1280 = vmatprep.subr.mxu0 0.0
        %1281 = vmatpush1.xpose.msra.mxu0 %v1278
        %1282 = vmatprep.subr.mxu0 0.0
        %1283 = vmatpush1.xpose.msra.mxu0 0.0
        %1284 = vmatprep.subr.mxu0 0.0
        %1285 = vmatpush1.xpose.msra.mxu0 0.0
        %1286 = vmatprep.subr.mxu0 0.0
        %1287 = vmatpush1.xpose.msra.mxu0 0.0
        %1288 = vmatprep.subr.mxu0 0.0
        %1289 = vmatpush1.xpose.msra.mxu0 0.0
        %1290 = vmatprep.subr.mxu0 0.0
        %1291 = vmatpush1.xpose.msra.mxu0 0.0
        %1292 = vmatprep.subr.mxu0 0.0
        %1293 = vmatpush1.xpose.msra.mxu0 0.0
        %1294 = vmatprep.subr.mxu0 0.0
        %1295 = vmatpush1.xpose.msra.mxu0 0.0
        %1296 = vmatprep.subr.mxu0 0.0
        %1297 = vmatpush1.xpose.msra.mxu0 0.0
        %1298 = vmatprep.subr.mxu0 0.0
        %1299 = vmatpush1.xpose.msra.mxu0 0.0
        %1300 = vmatprep.subr.mxu0 0.0
        %1301 = vmatpush1.xpose.msra.mxu0 0.0
        %1302 = vmatprep.subr.mxu0 0.0
        %1303 = vmatpush1.xpose.msra.mxu0 0.0
        %1304 = vmatprep.subr.mxu0 0.0
        %1305 = vmatpush1.xpose.msra.mxu0 0.0
        %1306 = vmatprep.subr.mxu0 0.0
        %1307 = vmatpush1.xpose.msra.mxu0 0.0
        %1308 = vmatprep.subr.mxu0 0.0
        %1309 = vmatpush1.xpose.msra.mxu0 0.0
        %1310 = vmatprep.subr.mxu0 0.0
        %1311 = vmatpush1.xpose.msra.mxu0 0.0
        %1312 = vmatprep.subr.mxu0 0.0
        %1313 = vmatpush1.xpose.msra.mxu0 0.0
        %1314 = vmatprep.subr.mxu0 0.0
        %1315 = vmatpush1.xpose.msra.mxu0 0.0
        %1316 = vmatprep.subr.mxu0 0.0
        %1317 = vmatpush1.xpose.msra.mxu0 0.0
        %1318 = vmatprep.subr.mxu0 0.0
        %1319 = vmatpush1.xpose.msra.mxu0 0.0
        %1320 = vmatprep.subr.mxu0 0.0
        %1321 = vmatpush1.xpose.msra.mxu0 0.0
        %1322 = vmatprep.subr.mxu0 0.0
        %1323 = vmatpush1.xpose.msra.mxu0 0.0
        %1324 = vmatprep.subr.mxu0 0.0
        %1325 = vmatpush1.xpose.msra.mxu0 0.0
        %1326 = vmatprep.subr.mxu0 0.0
        %1327 = vmatpush1.xpose.msra.mxu0 0.0
        %1328 = vmatprep.subr.mxu0 0.0
        %1329 = vmatpush1.xpose.msra.mxu0 0.0
        %1330 = vmatprep.subr.mxu0 0.0
        %1331 = vmatpush1.xpose.msra.mxu0 0.0
        %1332 = vmatprep.subr.mxu0 0.0
        %1333 = vmatpush1.xpose.msra.mxu0 0.0
        %1334 = vmatprep.subr.mxu0 0.0
        %1335 = vmatpush1.xpose.msra.mxu0 0.0
        %1336 = vmatprep.subr.mxu0 0.0
        %1337 = vmatpush1.xpose.msra.mxu0 0.0
        %1338 = vmatprep.subr.mxu0 0.0
        %1339 = vmatpush1.xpose.msra.mxu0 0.0
        %1340 = vmatprep.subr.mxu0 0.0
        %1341 = vmatpush1.xpose.msra.mxu0 0.0
        %1342 = vmatprep.subr.mxu0 0.0
        %1343 = vmatpush1.xpose.msra.mxu0 0.0
        %1344 = vmatprep.mubr.f32.mxu0 0.0
        %1345 = vmatmul.mubr.f32.gmra.mrb[0].mxu0 %v1275
        %v1346 = vpop.f32.mrb[0].mxu0
        %v1347 = vadd.f32 0.0, %v1346
        %v1348 = vpop.f32.mrb[0].mxu0
        %1349 = vdwg.mxu0
        %v1351 = vsel %vm1197, %v564, 0
        %v1354 = vsel %vm1197, %v844, 0
        %1356 = vmatprep.subr.mxu0 0.0
        %1357 = vmatpush1.xpose.msra.mxu0 %v1354
        %1358 = vmatprep.subr.mxu0 0.0
        %1359 = vmatpush1.xpose.msra.mxu0 0.0
        %1360 = vmatprep.subr.mxu0 0.0
        %1361 = vmatpush1.xpose.msra.mxu0 0.0
        %1362 = vmatprep.subr.mxu0 0.0
        %1363 = vmatpush1.xpose.msra.mxu0 0.0
        %1364 = vmatprep.subr.mxu0 0.0
        %1365 = vmatpush1.xpose.msra.mxu0 0.0
        %1366 = vmatprep.subr.mxu0 0.0
        %1367 = vmatpush1.xpose.msra.mxu0 0.0
        %1368 = vmatprep.subr.mxu0 0.0
        %1369 = vmatpush1.xpose.msra.mxu0 0.0
        %1370 = vmatprep.subr.mxu0 0.0
        %1371 = vmatpush1.xpose.msra.mxu0 0.0
        %1372 = vmatprep.subr.mxu0 0.0
        %1373 = vmatpush1.xpose.msra.mxu0 0.0
        %1374 = vmatprep.subr.mxu0 0.0
        %1375 = vmatpush1.xpose.msra.mxu0 0.0
        %1376 = vmatprep.subr.mxu0 0.0
        %1377 = vmatpush1.xpose.msra.mxu0 0.0
        %1378 = vmatprep.subr.mxu0 0.0
        %1379 = vmatpush1.xpose.msra.mxu0 0.0
        %1380 = vmatprep.subr.mxu0 0.0
        %1381 = vmatpush1.xpose.msra.mxu0 0.0
        %1382 = vmatprep.subr.mxu0 0.0
        %1383 = vmatpush1.xpose.msra.mxu0 0.0
        %1384 = vmatprep.subr.mxu0 0.0
        %1385 = vmatpush1.xpose.msra.mxu0 0.0
        %1386 = vmatprep.subr.mxu0 0.0
        %1387 = vmatpush1.xpose.msra.mxu0 0.0
        %1388 = vmatprep.subr.mxu0 0.0
        %1389 = vmatpush1.xpose.msra.mxu0 0.0
        %1390 = vmatprep.subr.mxu0 0.0
        %1391 = vmatpush1.xpose.msra.mxu0 0.0
        %1392 = vmatprep.subr.mxu0 0.0
        %1393 = vmatpush1.xpose.msra.mxu0 0.0
        %1394 = vmatprep.subr.mxu0 0.0
        %1395 = vmatpush1.xpose.msra.mxu0 0.0
        %1396 = vmatprep.subr.mxu0 0.0
        %1397 = vmatpush1.xpose.msra.mxu0 0.0
        %1398 = vmatprep.subr.mxu0 0.0
        %1399 = vmatpush1.xpose.msra.mxu0 0.0
        %1400 = vmatprep.subr.mxu0 0.0
        %1401 = vmatpush1.xpose.msra.mxu0 0.0
        %1402 = vmatprep.subr.mxu0 0.0
        %1403 = vmatpush1.xpose.msra.mxu0 0.0
        %1404 = vmatprep.subr.mxu0 0.0
        %1405 = vmatpush1.xpose.msra.mxu0 0.0
        %1406 = vmatprep.subr.mxu0 0.0
        %1407 = vmatpush1.xpose.msra.mxu0 0.0
        %1408 = vmatprep.subr.mxu0 0.0
        %1409 = vmatpush1.xpose.msra.mxu0 0.0
        %1410 = vmatprep.subr.mxu0 0.0
        %1411 = vmatpush1.xpose.msra.mxu0 0.0
        %1412 = vmatprep.subr.mxu0 0.0
        %1413 = vmatpush1.xpose.msra.mxu0 0.0
        %1414 = vmatprep.subr.mxu0 0.0
        %1415 = vmatpush1.xpose.msra.mxu0 0.0
        %1416 = vmatprep.subr.mxu0 0.0
        %1417 = vmatpush1.xpose.msra.mxu0 0.0
        %1418 = vmatprep.subr.mxu0 0.0
        %1419 = vmatpush1.xpose.msra.mxu0 0.0
        %1420 = vmatprep.mubr.f32.mxu0 0.0
        %1421 = vmatmul.mubr.f32.gmra.mrb[0].mxu0 %v1351
        %v1422 = vpop.f32.mrb[0].mxu0
        %v1423 = vadd.f32 0.0, %v1422
        %v1424 = vpop.f32.mrb[0].mxu0
        %1425 = vdwg.mxu0
        %v1427 = vsel %vm1197, %v634, 0
        %v1430 = vsel %vm1197, %v914, 0
        %1432 = vmatprep.subr.mxu0 0.0
        %1433 = vmatpush1.xpose.msra.mxu0 %v1430
        %1434 = vmatprep.subr.mxu0 0.0
        %1435 = vmatpush1.xpose.msra.mxu0 0.0
        %1436 = vmatprep.subr.mxu0 0.0
        %1437 = vmatpush1.xpose.msra.mxu0 0.0
        %1438 = vmatprep.subr.mxu0 0.0
        %1439 = vmatpush1.xpose.msra.mxu0 0.0
        %1440 = vmatprep.subr.mxu0 0.0
        %1441 = vmatpush1.xpose.msra.mxu0 0.0
        %1442 = vmatprep.subr.mxu0 0.0
        %1443 = vmatpush1.xpose.msra.mxu0 0.0
        %1444 = vmatprep.subr.mxu0 0.0
        %1445 = vmatpush1.xpose.msra.mxu0 0.0
        %1446 = vmatprep.subr.mxu0 0.0
        %1447 = vmatpush1.xpose.msra.mxu0 0.0
        %1448 = vmatprep.subr.mxu0 0.0
        %1449 = vmatpush1.xpose.msra.mxu0 0.0
        %1450 = vmatprep.subr.mxu0 0.0
        %1451 = vmatpush1.xpose.msra.mxu0 0.0
        %1452 = vmatprep.subr.mxu0 0.0
        %1453 = vmatpush1.xpose.msra.mxu0 0.0
        %1454 = vmatprep.subr.mxu0 0.0
        %1455 = vmatpush1.xpose.msra.mxu0 0.0
        %1456 = vmatprep.subr.mxu0 0.0
        %1457 = vmatpush1.xpose.msra.mxu0 0.0
        %1458 = vmatprep.subr.mxu0 0.0
        %1459 = vmatpush1.xpose.msra.mxu0 0.0
        %1460 = vmatprep.subr.mxu0 0.0
        %1461 = vmatpush1.xpose.msra.mxu0 0.0
        %1462 = vmatprep.subr.mxu0 0.0
        %1463 = vmatpush1.xpose.msra.mxu0 0.0
        %1464 = vmatprep.subr.mxu0 0.0
        %1465 = vmatpush1.xpose.msra.mxu0 0.0
        %1466 = vmatprep.subr.mxu0 0.0
        %1467 = vmatpush1.xpose.msra.mxu0 0.0
        %1468 = vmatprep.subr.mxu0 0.0
        %1469 = vmatpush1.xpose.msra.mxu0 0.0
        %1470 = vmatprep.subr.mxu0 0.0
        %1471 = vmatpush1.xpose.msra.mxu0 0.0
        %1472 = vmatprep.subr.mxu0 0.0
        %1473 = vmatpush1.xpose.msra.mxu0 0.0
        %1474 = vmatprep.subr.mxu0 0.0
        %1475 = vmatpush1.xpose.msra.mxu0 0.0
        %1476 = vmatprep.subr.mxu0 0.0
        %1477 = vmatpush1.xpose.msra.mxu0 0.0
        %1478 = vmatprep.subr.mxu0 0.0
        %1479 = vmatpush1.xpose.msra.mxu0 0.0
        %1480 = vmatprep.subr.mxu0 0.0
        %1481 = vmatpush1.xpose.msra.mxu0 0.0
        %1482 = vmatprep.subr.mxu0 0.0
        %1483 = vmatpush1.xpose.msra.mxu0 0.0
        %1484 = vmatprep.subr.mxu0 0.0
        %1485 = vmatpush1.xpose.msra.mxu0 0.0
        %1486 = vmatprep.subr.mxu0 0.0
        %1487 = vmatpush1.xpose.msra.mxu0 0.0
        %1488 = vmatprep.subr.mxu0 0.0
        %1489 = vmatpush1.xpose.msra.mxu0 0.0
        %1490 = vmatprep.subr.mxu0 0.0
        %1491 = vmatpush1.xpose.msra.mxu0 0.0
        %1492 = vmatprep.subr.mxu0 0.0
        %1493 = vmatpush1.xpose.msra.mxu0 0.0
        %1494 = vmatprep.subr.mxu0 0.0
        %1495 = vmatpush1.xpose.msra.mxu0 0.0
        %1496 = vmatprep.mubr.f32.mxu0 0.0
        %1497 = vmatmul.mubr.f32.gmra.mrb[0].mxu0 %v1427
        %v1498 = vpop.f32.mrb[0].mxu0
        %v1499 = vadd.f32 0.0, %v1498
        %v1500 = vpop.f32.mrb[0].mxu0
        %1501 = vdwg.mxu0
        %v1502 = vsel %vm1197, %v1271, -inf
        %1503 = vmax.xlane.f32.xlu0 %v1502
        %v1504 = vpop.xlane.xlu0 %1503
        %v1505 = vsel %vm1197, %v1347, -inf
        %1506 = vmax.xlane.f32.xlu0 %v1505
        %v1507 = vpop.xlane.xlu0 %1506
        %v1508 = vsel %vm1197, %v1423, -inf
        %1509 = vmax.xlane.f32.xlu0 %v1508
        %v1510 = vpop.xlane.xlu0 %1509
        %v1511 = vsel %vm1197, %v1499, -inf
        %1512 = vmax.xlane.f32.xlu0 %v1511
        %v1513 = vpop.xlane.xlu0 %1512
        %v1514 = vsub.f32 %v1271, %v1504
        %v1515 = vsub.f32 %v1347, %v1507
        %v1516 = vsub.f32 %v1423, %v1510
        %v1517 = vsub.f32 %v1499, %v1513
        %v1518 = vmul.f32 %v1514, 1.442695
        %v1519 = vpow.pop %v1518
        %v1520 = vmul.f32 %v1515, 1.442695
        %v1521 = vpow.pop %v1520
        %v1522 = vmul.f32 %v1516, 1.442695
        %v1523 = vpow.pop %v1522
        %v1524 = vmul.f32 %v1517, 1.442695
        %v1525 = vpow.pop %v1524
        %v1526 = vsel %vm1197, %v1519, 0.0
        %1527 = vadd.xlane.f32.xlu0 %v1526
        %v1528 = vpop.xlane.xlu0 %1527
        %v1529 = vsel %vm1197, %v1521, 0.0
        %1530 = vadd.xlane.f32.xlu0 %v1529
        %v1531 = vpop.xlane.xlu0 %1530
        %v1532 = vsel %vm1197, %v1523, 0.0
        %1533 = vadd.xlane.f32.xlu0 %v1532
        %v1534 = vpop.xlane.xlu0 %1533
        %v1535 = vsel %vm1197, %v1525, 0.0
        %1536 = vadd.xlane.f32.xlu0 %v1535
        %v1537 = vpop.xlane.xlu0 %1536
        %v1538 = vrcp.pop %v1528
        %v1539 = vrcp.pop %v1531
        %v1540 = vrcp.pop %v1534
        %v1541 = vrcp.pop %v1537
        %v1542 = vmul.f32 %v1519, %v1538
        %v1543 = vmul.f32 %v1521, %v1539
        %v1544 = vmul.f32 %v1523, %v1540
        %v1545 = vmul.f32 %v1525, %v1541
        %v1547 = vsel %vm1197, %v1542, 0
        %1549 = vmatprep.subr.mxu0 0.0
        %1550 = vmatpush1.msra.mxu0 %v984
        %1551 = vmatprep.subr.mxu0 0.0
        %1552 = vmatpush1.msra.mxu0 0.0
        %1553 = vmatprep.subr.mxu0 0.0
        %1554 = vmatpush1.msra.mxu0 0.0
        %1555 = vmatprep.subr.mxu0 0.0
        %1556 = vmatpush1.msra.mxu0 0.0
        %1557 = vmatprep.subr.mxu0 0.0
        %1558 = vmatpush1.msra.mxu0 0.0
        %1559 = vmatprep.subr.mxu0 0.0
        %1560 = vmatpush1.msra.mxu0 0.0
        %1561 = vmatprep.subr.mxu0 0.0
        %1562 = vmatpush1.msra.mxu0 0.0
        %1563 = vmatprep.subr.mxu0 0.0
        %1564 = vmatpush1.msra.mxu0 0.0
        %1565 = vmatprep.subr.mxu0 0.0
        %1566 = vmatpush1.msra.mxu0 0.0
        %1567 = vmatprep.subr.mxu0 0.0
        %1568 = vmatpush1.msra.mxu0 0.0
        %1569 = vmatprep.subr.mxu0 0.0
        %1570 = vmatpush1.msra.mxu0 0.0
        %1571 = vmatprep.subr.mxu0 0.0
        %1572 = vmatpush1.msra.mxu0 0.0
        %1573 = vmatprep.subr.mxu0 0.0
        %1574 = vmatpush1.msra.mxu0 0.0
        %1575 = vmatprep.subr.mxu0 0.0
        %1576 = vmatpush1.msra.mxu0 0.0
        %1577 = vmatprep.subr.mxu0 0.0
        %1578 = vmatpush1.msra.mxu0 0.0
        %1579 = vmatprep.subr.mxu0 0.0
        %1580 = vmatpush1.msra.mxu0 0.0
        %1581 = vmatprep.subr.mxu0 0.0
        %1582 = vmatpush1.msra.mxu0 0.0
        %1583 = vmatprep.subr.mxu0 0.0
        %1584 = vmatpush1.msra.mxu0 0.0
        %1585 = vmatprep.subr.mxu0 0.0
        %1586 = vmatpush1.msra.mxu0 0.0
        %1587 = vmatprep.subr.mxu0 0.0
        %1588 = vmatpush1.msra.mxu0 0.0
        %1589 = vmatprep.subr.mxu0 0.0
        %1590 = vmatpush1.msra.mxu0 0.0
        %1591 = vmatprep.subr.mxu0 0.0
        %1592 = vmatpush1.msra.mxu0 0.0
        %1593 = vmatprep.subr.mxu0 0.0
        %1594 = vmatpush1.msra.mxu0 0.0
        %1595 = vmatprep.subr.mxu0 0.0
        %1596 = vmatpush1.msra.mxu0 0.0
        %1597 = vmatprep.subr.mxu0 0.0
        %1598 = vmatpush1.msra.mxu0 0.0
        %1599 = vmatprep.subr.mxu0 0.0
        %1600 = vmatpush1.msra.mxu0 0.0
        %1601 = vmatprep.subr.mxu0 0.0
        %1602 = vmatpush1.msra.mxu0 0.0
        %1603 = vmatprep.subr.mxu0 0.0
        %1604 = vmatpush1.msra.mxu0 0.0
        %1605 = vmatprep.subr.mxu0 0.0
        %1606 = vmatpush1.msra.mxu0 0.0
        %1607 = vmatprep.subr.mxu0 0.0
        %1608 = vmatpush1.msra.mxu0 0.0
        %1609 = vmatprep.subr.mxu0 0.0
        %1610 = vmatpush1.msra.mxu0 0.0
        %1611 = vmatprep.subr.mxu0 0.0
        %1612 = vmatpush1.msra.mxu0 0.0
        %1613 = vmatprep.mubr.f32.mxu0 0.0
        %1614 = vmatmul.mubr.f32.gmra.mrb[0].mxu0 %v1547
        %v1615 = vpop.f32.mrb[0].mxu0
        %v1616 = vadd.f32 0.0, %v1615
        %v1617 = vpop.f32.mrb[0].mxu0
        %1618 = vdwg.mxu0
        %v1620 = vsel %vm1197, %v1543, 0
        %1622 = vmatprep.subr.mxu0 0.0
        %1623 = vmatpush1.msra.mxu0 %v1054
        %1624 = vmatprep.subr.mxu0 0.0
        %1625 = vmatpush1.msra.mxu0 0.0
        %1626 = vmatprep.subr.mxu0 0.0
        %1627 = vmatpush1.msra.mxu0 0.0
        %1628 = vmatprep.subr.mxu0 0.0
        %1629 = vmatpush1.msra.mxu0 0.0
        %1630 = vmatprep.subr.mxu0 0.0
        %1631 = vmatpush1.msra.mxu0 0.0
        %1632 = vmatprep.subr.mxu0 0.0
        %1633 = vmatpush1.msra.mxu0 0.0
        %1634 = vmatprep.subr.mxu0 0.0
        %1635 = vmatpush1.msra.mxu0 0.0
        %1636 = vmatprep.subr.mxu0 0.0
        %1637 = vmatpush1.msra.mxu0 0.0
        %1638 = vmatprep.subr.mxu0 0.0
        %1639 = vmatpush1.msra.mxu0 0.0
        %1640 = vmatprep.subr.mxu0 0.0
        %1641 = vmatpush1.msra.mxu0 0.0
        %1642 = vmatprep.subr.mxu0 0.0
        %1643 = vmatpush1.msra.mxu0 0.0
        %1644 = vmatprep.subr.mxu0 0.0
        %1645 = vmatpush1.msra.mxu0 0.0
        %1646 = vmatprep.subr.mxu0 0.0
        %1647 = vmatpush1.msra.mxu0 0.0
        %1648 = vmatprep.subr.mxu0 0.0
        %1649 = vmatpush1.msra.mxu0 0.0
        %1650 = vmatprep.subr.mxu0 0.0
        %1651 = vmatpush1.msra.mxu0 0.0
        %1652 = vmatprep.subr.mxu0 0.0
        %1653 = vmatpush1.msra.mxu0 0.0
        %1654 = vmatprep.subr.mxu0 0.0
        %1655 = vmatpush1.msra.mxu0 0.0
        %1656 = vmatprep.subr.mxu0 0.0
        %1657 = vmatpush1.msra.mxu0 0.0
        %1658 = vmatprep.subr.mxu0 0.0
        %1659 = vmatpush1.msra.mxu0 0.0
        %1660 = vmatprep.subr.mxu0 0.0
        %1661 = vmatpush1.msra.mxu0 0.0
        %1662 = vmatprep.subr.mxu0 0.0
        %1663 = vmatpush1.msra.mxu0 0.0
        %1664 = vmatprep.subr.mxu0 0.0
        %1665 = vmatpush1.msra.mxu0 0.0
        %1666 = vmatprep.subr.mxu0 0.0
        %1667 = vmatpush1.msra.mxu0 0.0
        %1668 = vmatprep.subr.mxu0 0.0
        %1669 = vmatpush1.msra.mxu0 0.0
        %1670 = vmatprep.subr.mxu0 0.0
        %1671 = vmatpush1.msra.mxu0 0.0
        %1672 = vmatprep.subr.mxu0 0.0
        %1673 = vmatpush1.msra.mxu0 0.0
        %1674 = vmatprep.subr.mxu0 0.0
        %1675 = vmatpush1.msra.mxu0 0.0
        %1676 = vmatprep.subr.mxu0 0.0
        %1677 = vmatpush1.msra.mxu0 0.0
        %1678 = vmatprep.subr.mxu0 0.0
        %1679 = vmatpush1.msra.mxu0 0.0
        %1680 = vmatprep.subr.mxu0 0.0
        %1681 = vmatpush1.msra.mxu0 0.0
        %1682 = vmatprep.subr.mxu0 0.0
        %1683 = vmatpush1.msra.mxu0 0.0
        %1684 = vmatprep.subr.mxu0 0.0
        %1685 = vmatpush1.msra.mxu0 0.0
        %1686 = vmatprep.mubr.f32.mxu0 0.0
        %1687 = vmatmul.mubr.f32.gmra.mrb[0].mxu0 %v1620
        %v1688 = vpop.f32.mrb[0].mxu0
        %v1689 = vadd.f32 0.0, %v1688
        %v1690 = vpop.f32.mrb[0].mxu0
        %1691 = vdwg.mxu0
        %v1693 = vsel %vm1197, %v1544, 0
        %1695 = vmatprep.subr.mxu0 0.0
        %1696 = vmatpush1.msra.mxu0 %v1124
        %1697 = vmatprep.subr.mxu0 0.0
        %1698 = vmatpush1.msra.mxu0 0.0
        %1699 = vmatprep.subr.mxu0 0.0
        %1700 = vmatpush1.msra.mxu0 0.0
        %1701 = vmatprep.subr.mxu0 0.0
        %1702 = vmatpush1.msra.mxu0 0.0
        %1703 = vmatprep.subr.mxu0 0.0
        %1704 = vmatpush1.msra.mxu0 0.0
        %1705 = vmatprep.subr.mxu0 0.0
        %1706 = vmatpush1.msra.mxu0 0.0
        %1707 = vmatprep.subr.mxu0 0.0
        %1708 = vmatpush1.msra.mxu0 0.0
        %1709 = vmatprep.subr.mxu0 0.0
        %1710 = vmatpush1.msra.mxu0 0.0
        %1711 = vmatprep.subr.mxu0 0.0
        %1712 = vmatpush1.msra.mxu0 0.0
        %1713 = vmatprep.subr.mxu0 0.0
        %1714 = vmatpush1.msra.mxu0 0.0
        %1715 = vmatprep.subr.mxu0 0.0
        %1716 = vmatpush1.msra.mxu0 0.0
        %1717 = vmatprep.subr.mxu0 0.0
        %1718 = vmatpush1.msra.mxu0 0.0
        %1719 = vmatprep.subr.mxu0 0.0
        %1720 = vmatpush1.msra.mxu0 0.0
        %1721 = vmatprep.subr.mxu0 0.0
        %1722 = vmatpush1.msra.mxu0 0.0
        %1723 = vmatprep.subr.mxu0 0.0
        %1724 = vmatpush1.msra.mxu0 0.0
        %1725 = vmatprep.subr.mxu0 0.0
        %1726 = vmatpush1.msra.mxu0 0.0
        %1727 = vmatprep.subr.mxu0 0.0
        %1728 = vmatpush1.msra.mxu0 0.0
        %1729 = vmatprep.subr.mxu0 0.0
        %1730 = vmatpush1.msra.mxu0 0.0
        %1731 = vmatprep.subr.mxu0 0.0
        %1732 = vmatpush1.msra.mxu0 0.0
        %1733 = vmatprep.subr.mxu0 0.0
        %1734 = vmatpush1.msra.mxu0 0.0
        %1735 = vmatprep.subr.mxu0 0.0
        %1736 = vmatpush1.msra.mxu0 0.0
        %1737 = vmatprep.subr.mxu0 0.0
        %1738 = vmatpush1.msra.mxu0 0.0
        %1739 = vmatprep.subr.mxu0 0.0
        %1740 = vmatpush1.msra.mxu0 0.0
        %1741 = vmatprep.subr.mxu0 0.0
        %1742 = vmatpush1.msra.mxu0 0.0
        %1743 = vmatprep.subr.mxu0 0.0
        %1744 = vmatpush1.msra.mxu0 0.0
        %1745 = vmatprep.subr.mxu0 0.0
        %1746 = vmatpush1.msra.mxu0 0.0
        %1747 = vmatprep.subr.mxu0 0.0
        %1748 = vmatpush1.msra.mxu0 0.0
        %1749 = vmatprep.subr.mxu0 0.0
        %1750 = vmatpush1.msra.mxu0 0.0
        %1751 = vmatprep.subr.mxu0 0.0
        %1752 = vmatpush1.msra.mxu0 0.0
        %1753 = vmatprep.subr.mxu0 0.0
        %1754 = vmatpush1.msra.mxu0 0.0
        %1755 = vmatprep.subr.mxu0 0.0
        %1756 = vmatpush1.msra.mxu0 0.0
        %1757 = vmatprep.subr.mxu0 0.0
        %1758 = vmatpush1.msra.mxu0 0.0
        %1759 = vmatprep.mubr.f32.mxu0 0.0
        %1760 = vmatmul.mubr.f32.gmra.mrb[0].mxu0 %v1693
        %v1761 = vpop.f32.mrb[0].mxu0
        %v1762 = vadd.f32 0.0, %v1761
        %v1763 = vpop.f32.mrb[0].mxu0
        %1764 = vdwg.mxu0
        %v1766 = vsel %vm1197, %v1545, 0
        %1768 = vmatprep.subr.mxu0 0.0
        %1769 = vmatpush1.msra.mxu0 %v1194
        %1770 = vmatprep.subr.mxu0 0.0
        %1771 = vmatpush1.msra.mxu0 0.0
        %1772 = vmatprep.subr.mxu0 0.0
        %1773 = vmatpush1.msra.mxu0 0.0
        %1774 = vmatprep.subr.mxu0 0.0
        %1775 = vmatpush1.msra.mxu0 0.0
        %1776 = vmatprep.subr.mxu0 0.0
        %1777 = vmatpush1.msra.mxu0 0.0
        %1778 = vmatprep.subr.mxu0 0.0
        %1779 = vmatpush1.msra.mxu0 0.0
        %1780 = vmatprep.subr.mxu0 0.0
        %1781 = vmatpush1.msra.mxu0 0.0
        %1782 = vmatprep.subr.mxu0 0.0
        %1783 = vmatpush1.msra.mxu0 0.0
        %1784 = vmatprep.subr.mxu0 0.0
        %1785 = vmatpush1.msra.mxu0 0.0
        %1786 = vmatprep.subr.mxu0 0.0
        %1787 = vmatpush1.msra.mxu0 0.0
        %1788 = vmatprep.subr.mxu0 0.0
        %1789 = vmatpush1.msra.mxu0 0.0
        %1790 = vmatprep.subr.mxu0 0.0
        %1791 = vmatpush1.msra.mxu0 0.0
        %1792 = vmatprep.subr.mxu0 0.0
        %1793 = vmatpush1.msra.mxu0 0.0
        %1794 = vmatprep.subr.mxu0 0.0
        %1795 = vmatpush1.msra.mxu0 0.0
        %1796 = vmatprep.subr.mxu0 0.0
        %1797 = vmatpush1.msra.mxu0 0.0
        %1798 = vmatprep.subr.mxu0 0.0
        %1799 = vmatpush1.msra.mxu0 0.0
        %1800 = vmatprep.subr.mxu0 0.0
        %1801 = vmatpush1.msra.mxu0 0.0
        %1802 = vmatprep.subr.mxu0 0.0
        %1803 = vmatpush1.msra.mxu0 0.0
        %1804 = vmatprep.subr.mxu0 0.0
        %1805 = vmatpush1.msra.mxu0 0.0
        %1806 = vmatprep.subr.mxu0 0.0
        %1807 = vmatpush1.msra.mxu0 0.0
        %1808 = vmatprep.subr.mxu0 0.0
        %1809 = vmatpush1.msra.mxu0 0.0
        %1810 = vmatprep.subr.mxu0 0.0
        %1811 = vmatpush1.msra.mxu0 0.0
        %1812 = vmatprep.subr.mxu0 0.0
        %1813 = vmatpush1.msra.mxu0 0.0
        %1814 = vmatprep.subr.mxu0 0.0
        %1815 = vmatpush1.msra.mxu0 0.0
        %1816 = vmatprep.subr.mxu0 0.0
        %1817 = vmatpush1.msra.mxu0 0.0
        %1818 = vmatprep.subr.mxu0 0.0
        %1819 = vmatpush1.msra.mxu0 0.0
        %1820 = vmatprep.subr.mxu0 0.0
        %1821 = vmatpush1.msra.mxu0 0.0
        %1822 = vmatprep.subr.mxu0 0.0
        %1823 = vmatpush1.msra.mxu0 0.0
        %1824 = vmatprep.subr.mxu0 0.0
        %1825 = vmatpush1.msra.mxu0 0.0
        %1826 = vmatprep.subr.mxu0 0.0
        %1827 = vmatpush1.msra.mxu0 0.0
        %1828 = vmatprep.subr.mxu0 0.0
        %1829 = vmatpush1.msra.mxu0 0.0
        %1830 = vmatprep.subr.mxu0 0.0
        %1831 = vmatpush1.msra.mxu0 0.0
        %1832 = vmatprep.mubr.f32.mxu0 0.0
        %1833 = vmatmul.mubr.f32.gmra.mrb[0].mxu0 %v1766
        %v1834 = vpop.f32.mrb[0].mxu0
        %v1835 = vadd.f32 0.0, %v1834
        %v1836 = vpop.f32.mrb[0].mxu0
        %1837 = vdwg.mxu0
        %v1838 = vld [vmem:[%s3] sm:$0xff]
        %v1839 = vld [vmem:[%s3 + $0x8] sm:$0xff]
        %v1840 = vld [vmem:[%s3 + $0x10] sm:$0xff]
        %v1841 = vld [vmem:[%s3 + $0x18] sm:$0xff]
        %v1843 = vsel %vm1197, %v1616, 0
        %1845 = vmatprep.subr.mxu0 0.0
        %1846 = vmatpush1.msra.mxu0 %v1838
        %1847 = vmatprep.subr.mxu0 0.0
        %1848 = vmatpush1.msra.mxu0 0.0
        %1849 = vmatprep.subr.mxu0 0.0
        %1850 = vmatpush1.msra.mxu0 0.0
        %1851 = vmatprep.subr.mxu0 0.0
        %1852 = vmatpush1.msra.mxu0 0.0
        %1853 = vmatprep.subr.mxu0 0.0
        %1854 = vmatpush1.msra.mxu0 0.0
        %1855 = vmatprep.subr.mxu0 0.0
        %1856 = vmatpush1.msra.mxu0 0.0
        %1857 = vmatprep.subr.mxu0 0.0
        %1858 = vmatpush1.msra.mxu0 0.0
        %1859 = vmatprep.subr.mxu0 0.0
        %1860 = vmatpush1.msra.mxu0 0.0
        %1861 = vmatprep.subr.mxu0 0.0
        %1862 = vmatpush1.msra.mxu0 0.0
        %1863 = vmatprep.subr.mxu0 0.0
        %1864 = vmatpush1.msra.mxu0 0.0
        %1865 = vmatprep.subr.mxu0 0.0
        %1866 = vmatpush1.msra.mxu0 0.0
        %1867 = vmatprep.subr.mxu0 0.0
        %1868 = vmatpush1.msra.mxu0 0.0
        %1869 = vmatprep.subr.mxu0 0.0
        %1870 = vmatpush1.msra.mxu0 0.0
        %1871 = vmatprep.subr.mxu0 0.0
        %1872 = vmatpush1.msra.mxu0 0.0
        %1873 = vmatprep.subr.mxu0 0.0
        %1874 = vmatpush1.msra.mxu0 0.0
        %1875 = vmatprep.subr.mxu0 0.0
        %1876 = vmatpush1.msra.mxu0 0.0
        %1877 = vmatprep.subr.mxu0 0.0
        %1878 = vmatpush1.msra.mxu0 0.0
        %1879 = vmatprep.subr.mxu0 0.0
        %1880 = vmatpush1.msra.mxu0 0.0
        %1881 = vmatprep.subr.mxu0 0.0
        %1882 = vmatpush1.msra.mxu0 0.0
        %1883 = vmatprep.subr.mxu0 0.0
        %1884 = vmatpush1.msra.mxu0 0.0
        %1885 = vmatprep.subr.mxu0 0.0
        %1886 = vmatpush1.msra.mxu0 0.0
        %1887 = vmatprep.subr.mxu0 0.0
        %1888 = vmatpush1.msra.mxu0 0.0
        %1889 = vmatprep.subr.mxu0 0.0
        %1890 = vmatpush1.msra.mxu0 0.0
        %1891 = vmatprep.subr.mxu0 0.0
        %1892 = vmatpush1.msra.mxu0 0.0
        %1893 = vmatprep.subr.mxu0 0.0
        %1894 = vmatpush1.msra.mxu0 0.0
        %1895 = vmatprep.subr.mxu0 0.0
        %1896 = vmatpush1.msra.mxu0 0.0
        %1897 = vmatprep.subr.mxu0 0.0
        %1898 = vmatpush1.msra.mxu0 0.0
        %1899 = vmatprep.subr.mxu0 0.0
        %1900 = vmatpush1.msra.mxu0 0.0
        %1901 = vmatprep.subr.mxu0 0.0
        %1902 = vmatpush1.msra.mxu0 0.0
        %1903 = vmatprep.subr.mxu0 0.0
        %1904 = vmatpush1.msra.mxu0 0.0
        %1905 = vmatprep.subr.mxu0 0.0
        %1906 = vmatpush1.msra.mxu0 0.0
        %1907 = vmatprep.subr.mxu0 0.0
        %1908 = vmatpush1.msra.mxu0 0.0
        %1909 = vmatprep.mubr.f32.mxu0 0.0
        %1910 = vmatmul.mubr.f32.gmra.mrb[0].mxu0 %v1843
        %v1911 = vpop.f32.mrb[0].mxu0
        %v1912 = vadd.f32 0.0, %v1911
        %v1913 = vpop.f32.mrb[0].mxu0
        %1914 = vdwg.mxu0
        %v1916 = vsel %vm1197, %v1689, 0
        %1918 = vmatprep.subr.mxu0 0.0
        %1919 = vmatpush1.msra.mxu0 %v1839
        %1920 = vmatprep.subr.mxu0 0.0
        %1921 = vmatpush1.msra.mxu0 0.0
        %1922 = vmatprep.subr.mxu0 0.0
        %1923 = vmatpush1.msra.mxu0 0.0
        %1924 = vmatprep.subr.mxu0 0.0
        %1925 = vmatpush1.msra.mxu0 0.0
        %1926 = vmatprep.subr.mxu0 0.0
        %1927 = vmatpush1.msra.mxu0 0.0
        %1928 = vmatprep.subr.mxu0 0.0
        %1929 = vmatpush1.msra.mxu0 0.0
        %1930 = vmatprep.subr.mxu0 0.0
        %1931 = vmatpush1.msra.mxu0 0.0
        %1932 = vmatprep.subr.mxu0 0.0
        %1933 = vmatpush1.msra.mxu0 0.0
        %1934 = vmatprep.subr.mxu0 0.0
        %1935 = vmatpush1.msra.mxu0 0.0
        %1936 = vmatprep.subr.mxu0 0.0
        %1937 = vmatpush1.msra.mxu0 0.0
        %1938 = vmatprep.subr.mxu0 0.0
        %1939 = vmatpush1.msra.mxu0 0.0
        %1940 = vmatprep.subr.mxu0 0.0
        %1941 = vmatpush1.msra.mxu0 0.0
        %1942 = vmatprep.subr.mxu0 0.0
        %1943 = vmatpush1.msra.mxu0 0.0
        %1944 = vmatprep.subr.mxu0 0.0
        %1945 = vmatpush1.msra.mxu0 0.0
        %1946 = vmatprep.subr.mxu0 0.0
        %1947 = vmatpush1.msra.mxu0 0.0
        %1948 = vmatprep.subr.mxu0 0.0
        %1949 = vmatpush1.msra.mxu0 0.0
        %1950 = vmatprep.subr.mxu0 0.0
        %1951 = vmatpush1.msra.mxu0 0.0
        %1952 = vmatprep.subr.mxu0 0.0
        %1953 = vmatpush1.msra.mxu0 0.0
        %1954 = vmatprep.subr.mxu0 0.0
        %1955 = vmatpush1.msra.mxu0 0.0
        %1956 = vmatprep.subr.mxu0 0.0
        %1957 = vmatpush1.msra.mxu0 0.0
        %1958 = vmatprep.subr.mxu0 0.0
        %1959 = vmatpush1.msra.mxu0 0.0
        %1960 = vmatprep.subr.mxu0 0.0
        %1961 = vmatpush1.msra.mxu0 0.0
        %1962 = vmatprep.subr.mxu0 0.0
        %1963 = vmatpush1.msra.mxu0 0.0
        %1964 = vmatprep.subr.mxu0 0.0
        %1965 = vmatpush1.msra.mxu0 0.0
        %1966 = vmatprep.subr.mxu0 0.0
        %1967 = vmatpush1.msra.mxu0 0.0
        %1968 = vmatprep.subr.mxu0 0.0
        %1969 = vmatpush1.msra.mxu0 0.0
        %1970 = vmatprep.subr.mxu0 0.0
        %1971 = vmatpush1.msra.mxu0 0.0
        %1972 = vmatprep.subr.mxu0 0.0
        %1973 = vmatpush1.msra.mxu0 0.0
        %1974 = vmatprep.subr.mxu0 0.0
        %1975 = vmatpush1.msra.mxu0 0.0
        %1976 = vmatprep.subr.mxu0 0.0
        %1977 = vmatpush1.msra.mxu0 0.0
        %1978 = vmatprep.subr.mxu0 0.0
        %1979 = vmatpush1.msra.mxu0 0.0
        %1980 = vmatprep.subr.mxu0 0.0
        %1981 = vmatpush1.msra.mxu0 0.0
        %1982 = vmatprep.mubr.f32.mxu0 0.0
        %1983 = vmatmul.mubr.f32.gmra.mrb[0].mxu0 %v1916
        %v1984 = vpop.f32.mrb[0].mxu0
        %v1985 = vadd.f32 0.0, %v1984
        %v1986 = vpop.f32.mrb[0].mxu0
        %1987 = vdwg.mxu0
        %v1989 = vsel %vm1197, %v1762, 0
        %1991 = vmatprep.subr.mxu0 0.0
        %1992 = vmatpush1.msra.mxu0 %v1840
        %1993 = vmatprep.subr.mxu0 0.0
        %1994 = vmatpush1.msra.mxu0 0.0
        %1995 = vmatprep.subr.mxu0 0.0
        %1996 = vmatpush1.msra.mxu0 0.0
        %1997 = vmatprep.subr.mxu0 0.0
        %1998 = vmatpush1.msra.mxu0 0.0
        %1999 = vmatprep.subr.mxu0 0.0
        %2000 = vmatpush1.msra.mxu0 0.0
        %2001 = vmatprep.subr.mxu0 0.0
        %2002 = vmatpush1.msra.mxu0 0.0
        %2003 = vmatprep.subr.mxu0 0.0
        %2004 = vmatpush1.msra.mxu0 0.0
        %2005 = vmatprep.subr.mxu0 0.0
        %2006 = vmatpush1.msra.mxu0 0.0
        %2007 = vmatprep.subr.mxu0 0.0
        %2008 = vmatpush1.msra.mxu0 0.0
        %2009 = vmatprep.subr.mxu0 0.0
        %2010 = vmatpush1.msra.mxu0 0.0
        %2011 = vmatprep.subr.mxu0 0.0
        %2012 = vmatpush1.msra.mxu0 0.0
        %2013 = vmatprep.subr.mxu0 0.0
        %2014 = vmatpush1.msra.mxu0 0.0
        %2015 = vmatprep.subr.mxu0 0.0
        %2016 = vmatpush1.msra.mxu0 0.0
        %2017 = vmatprep.subr.mxu0 0.0
        %2018 = vmatpush1.msra.mxu0 0.0
        %2019 = vmatprep.subr.mxu0 0.0
        %2020 = vmatpush1.msra.mxu0 0.0
        %2021 = vmatprep.subr.mxu0 0.0
        %2022 = vmatpush1.msra.mxu0 0.0
        %2023 = vmatprep.subr.mxu0 0.0
        %2024 = vmatpush1.msra.mxu0 0.0
        %2025 = vmatprep.subr.mxu0 0.0
        %2026 = vmatpush1.msra.mxu0 0.0
        %2027 = vmatprep.subr.mxu0 0.0
        %2028 = vmatpush1.msra.mxu0 0.0
        %2029 = vmatprep.subr.mxu0 0.0
        %2030 = vmatpush1.msra.mxu0 0.0
        %2031 = vmatprep.subr.mxu0 0.0
        %2032 = vmatpush1.msra.mxu0 0.0
        %2033 = vmatprep.subr.mxu0 0.0
        %2034 = vmatpush1.msra.mxu0 0.0
        %2035 = vmatprep.subr.mxu0 0.0
        %2036 = vmatpush1.msra.mxu0 0.0
        %2037 = vmatprep.subr.mxu0 0.0
        %2038 = vmatpush1.msra.mxu0 0.0
        %2039 = vmatprep.subr.mxu0 0.0
        %2040 = vmatpush1.msra.mxu0 0.0
        %2041 = vmatprep.subr.mxu0 0.0
        %2042 = vmatpush1.msra.mxu0 0.0
        %2043 = vmatprep.subr.mxu0 0.0
        %2044 = vmatpush1.msra.mxu0 0.0
        %2045 = vmatprep.subr.mxu0 0.0
        %2046 = vmatpush1.msra.mxu0 0.0
        %2047 = vmatprep.subr.mxu0 0.0
        %2048 = vmatpush1.msra.mxu0 0.0
        %2049 = vmatprep.subr.mxu0 0.0
        %2050 = vmatpush1.msra.mxu0 0.0
        %2051 = vmatprep.subr.mxu0 0.0
        %2052 = vmatpush1.msra.mxu0 0.0
        %2053 = vmatprep.subr.mxu0 0.0
        %2054 = vmatpush1.msra.mxu0 0.0
        %2055 = vmatprep.mubr.f32.mxu0 0.0
        %2056 = vmatmul.mubr.f32.gmra.mrb[0].mxu0 %v1989
        %v2057 = vpop.f32.mrb[0].mxu0
        %v2058 = vadd.f32 0.0, %v2057
        %v2059 = vpop.f32.mrb[0].mxu0
        %2060 = vdwg.mxu0
        %v2062 = vsel %vm1197, %v1835, 0
        %2064 = vmatprep.subr.mxu0 0.0
        %2065 = vmatpush1.msra.mxu0 %v1841
        %2066 = vmatprep.subr.mxu0 0.0
        %2067 = vmatpush1.msra.mxu0 0.0
        %2068 = vmatprep.subr.mxu0 0.0
        %2069 = vmatpush1.msra.mxu0 0.0
        %2070 = vmatprep.subr.mxu0 0.0
        %2071 = vmatpush1.msra.mxu0 0.0
        %2072 = vmatprep.subr.mxu0 0.0
        %2073 = vmatpush1.msra.mxu0 0.0
        %2074 = vmatprep.subr.mxu0 0.0
        %2075 = vmatpush1.msra.mxu0 0.0
        %2076 = vmatprep.subr.mxu0 0.0
        %2077 = vmatpush1.msra.mxu0 0.0
        %2078 = vmatprep.subr.mxu0 0.0
        %2079 = vmatpush1.msra.mxu0 0.0
        %2080 = vmatprep.subr.mxu0 0.0
        %2081 = vmatpush1.msra.mxu0 0.0
        %2082 = vmatprep.subr.mxu0 0.0
        %2083 = vmatpush1.msra.mxu0 0.0
        %2084 = vmatprep.subr.mxu0 0.0
        %2085 = vmatpush1.msra.mxu0 0.0
        %2086 = vmatprep.subr.mxu0 0.0
        %2087 = vmatpush1.msra.mxu0 0.0
        %2088 = vmatprep.subr.mxu0 0.0
        %2089 = vmatpush1.msra.mxu0 0.0
        %2090 = vmatprep.subr.mxu0 0.0
        %2091 = vmatpush1.msra.mxu0 0.0
        %2092 = vmatprep.subr.mxu0 0.0
        %2093 = vmatpush1.msra.mxu0 0.0
        %2094 = vmatprep.subr.mxu0 0.0
        %2095 = vmatpush1.msra.mxu0 0.0
        %2096 = vmatprep.subr.mxu0 0.0
        %2097 = vmatpush1.msra.mxu0 0.0
        %2098 = vmatprep.subr.mxu0 0.0
        %2099 = vmatpush1.msra.mxu0 0.0
        %2100 = vmatprep.subr.mxu0 0.0
        %2101 = vmatpush1.msra.mxu0 0.0
        %2102 = vmatprep.subr.mxu0 0.0
        %2103 = vmatpush1.msra.mxu0 0.0
        %2104 = vmatprep.subr.mxu0 0.0
        %2105 = vmatpush1.msra.mxu0 0.0
        %2106 = vmatprep.subr.mxu0 0.0
        %2107 = vmatpush1.msra.mxu0 0.0
        %2108 = vmatprep.subr.mxu0 0.0
        %2109 = vmatpush1.msra.mxu0 0.0
        %2110 = vmatprep.subr.mxu0 0.0
        %2111 = vmatpush1.msra.mxu0 0.0
        %2112 = vmatprep.subr.mxu0 0.0
        %2113 = vmatpush1.msra.mxu0 0.0
        %2114 = vmatprep.subr.mxu0 0.0
        %2115 = vmatpush1.msra.mxu0 0.0
        %2116 = vmatprep.subr.mxu0 0.0
        %2117 = vmatpush1.msra.mxu0 0.0
        %2118 = vmatprep.subr.mxu0 0.0
        %2119 = vmatpush1.msra.mxu0 0.0
        %2120 = vmatprep.subr.mxu0 0.0
        %2121 = vmatpush1.msra.mxu0 0.0
        %2122 = vmatprep.subr.mxu0 0.0
        %2123 = vmatpush1.msra.mxu0 0.0
        %2124 = vmatprep.subr.mxu0 0.0
        %2125 = vmatpush1.msra.mxu0 0.0
        %2126 = vmatprep.subr.mxu0 0.0
        %2127 = vmatpush1.msra.mxu0 0.0
        %2128 = vmatprep.mubr.f32.mxu0 0.0
        %2129 = vmatmul.mubr.f32.gmra.mrb[0].mxu0 %v2062
        %v2130 = vpop.f32.mrb[0].mxu0
        %v2131 = vadd.f32 0.0, %v2130
        %v2132 = vpop.f32.mrb[0].mxu0
        %2133 = vdwg.mxu0
        %v2134 = vsel %vm353, %v1912, 0.0
        %v2135 = vsel %vm353, %v1985, 0.0
        %v2136 = vadd.f32 %v2134, %v2135
        %v2137 = vsel %vm353, %v2058, 0.0
        %v2138 = vadd.f32 %v2136, %v2137
        %v2139 = vsel %vm353, %v2131, 0.0
        %v2140 = vadd.f32 %v2138, %v2139
        %v2141 = vld [vmem:[%s4] sm:$0x1]
        %v2143 = vlaneseq
        %v2144 = vshrl.u32 %v2143, 7
        %v2145 = vsub.s32 0, %v2144
        %v2146 = vrot.slane %v2141, %v2145
        %v2148 = vadd.f32 %v2140, %v2146
        %2149 = vst.msk [vmem:[%s215] sm:$0xff] %vm353, %v2148
        %s2150 = sand.u32 %s137, 1
        %s2151 = scalar_lea.sflag [#allocation3], %s2150
        %s2152 = sand.u32 %s137, 1
        %s2153 = smul.addr %s2152, 8
        %s2154 = scalar_lea.vmem [#allocation2], %s2153
        // Predicated region
        $region41: #{tpu_custom_call.1} parent=39 // pred_check
          %p2155 = pneg %p147
        $region42: #{tpu_custom_call.1} parent=39 // pred_check_branch
          %2157 = sbr.rel (%p2155) target = $region44
        $region43: #{tpu_custom_call.1} parent=39 // pred_region
          %s2159 = ssub.s32 128, 128
          %2160 = vsyncadd %s2151, %s2159
          %s2161 = smul.addr %s19, 128
          %s2162 = scalar_lea.hbm %s5, %s2161
          %s2164 = sshll.u32 %s2154, 4
          %s2165 = int_to_ptr.vmem [resolvable:$true] %s2164
          %2167 = dma.vmem_to_hbm [thread:$0]  %s2165, 128, %s2162, %s2151
        $region44: #{tpu_custom_call.1} parent=39 // pred_fallthru
          _
      $region40: #{tpu_custom_call.1} parent=5 // pred_fallthru
        _
      %p2168 = scmp.le.s32.totalorder 2, %s14
      // Predicated region
      $region45: #{tpu_custom_call.1} parent=5 // pred_check
        %p2169 = pneg %p2168
      $region46: #{tpu_custom_call.1} parent=5 // pred_check_branch
        %2171 = sbr.rel (%p2169) target = $region48
      $region47: #{tpu_custom_call.1} parent=5 // pred_region
        %s2172 = ssub.s32 %s14, 2
        // Predicated region
        $region49: #{tpu_custom_call.1} parent=47 // pred_check
          %p2173 = pneg %p153
        $region50: #{tpu_custom_call.1} parent=47 // pred_check_branch
          %2175 = sbr.rel (%p2173) target = $region52
        $region51: #{tpu_custom_call.1} parent=47 // pred_region
          %s2176 = sand.u32 %s138, 1
          %s2177 = scalar_lea.sflag [#allocation3], %s2176
          %s2178 = sand.u32 %s138, 1
          %s2179 = smul.addr %s2178, 8
          %s2180 = scalar_lea.vmem [#allocation2], %s2179
          %2181 = dma.done %s2177, 128
        $region52: #{tpu_custom_call.1} parent=47 // pred_fallthru
          _
      $region48: #{tpu_custom_call.1} parent=5 // pred_fallthru
        _
    $region6: #{tpu_custom_call.1} parent=1 // loop_footer
      %s18 = sadd.s32 1, %s14
    $region7: #{tpu_custom_call.1} parent=1 // loop_footer_branch
      %13 = sbr.rel target = $region3
    $region8: #{tpu_custom_call.1} parent=1 // loop_exit
      _
    %2182 = vsyncpa [#allocation3], 1
    %s2183 = scalar_lea.sflag [#allocation3], 1
    %2184 = vsyncpa %s2183, 1

</llo_original>
